<compile_context>
chip_gen: v5e
topology: v5e:2x2
jax: 0.10.0
libtpu: 0.0.40
codegen_flags: <defaults>
</compile_context>

<pallas_src>
import math
import functools

import jax
import jax.numpy as jnp
from jax.experimental import pallas as pl
from jax.experimental.pallas import tpu as pltpu

STATE_DIM = 15
LAYER_SIZES = [(15, 128), (128, 128), (128, 64), (64, 1)]       # PyTorch (in, out)
# Zero-padded (out_pad, in_pad) per layer, PyTorch [out, in] orientation (lane = in).
PADDED_SIZES = [(128, 16), (128, 128), (128, 128), (8, 128)]
IN_PAD0 = PADDED_SIZES[0][1]       # 16  (15 features -> 16)
OUT_PAD = PADDED_SIZES[-1][0]      # 8   (row 0 is the real action)
BLOCK_B = 128                      # batch columns per grid step

# Set True on v6e/v7x when MXU-bound at large batch (loosen test tol to ~2e-2).
USE_BF16_MATMUL = False


# ----------------------------------------------------------------------------
# Pallas kernel: fused NoisyNet weight composition + 4-layer MLP (batch on lanes)
# ----------------------------------------------------------------------------
def policy_mlp_kernel(x_ref, *refs):
    # refs = 4 layers x (w_mu, w_sigma, b_mu, b_sigma, eps_in_row, eps_out_col), out_ref
    out_ref = refs[-1]
    p = refs[:-1]

    h = x_ref[...]                                        # (IN_PAD0, BLOCK_B) f32
    for li in range(4):
        wmu, wsg, bmu, bsg, ei, eo = p[6 * li: 6 * (li + 1)]
        # Effective NoisyNet params composed on the VPU (hidden under MXU/DMA slack).
        # eo: [out_pad, 1], ei: [1, in_pad]  ->  outer(eps_out, eps_in)
        w = wmu[...] + wsg[...] * (eo[...] * ei[...])     # (out_pad, in_pad)
        b = bmu[...] + bsg[...] * eo[...]                 # (out_pad, 1)
        if USE_BF16_MATMUL:
            w = w.astype(jnp.bfloat16)
            h = h.astype(jnp.bfloat16)
        h = jnp.dot(w, h, preferred_element_type=jnp.float32) + b
        if li < 3:
            h = jnp.maximum(h, 0.0)                       # ReLU (VPU, f32)
    # Final tile is (8, BLOCK_B): one vreg of tanh; padded rows are tanh(0) = 0.
    out_ref[...] = jnp.tanh(h)


# ----------------------------------------------------------------------------
# Wrapper: batch grid, lane-dense specs, VMEM-resident weights
# ----------------------------------------------------------------------------
def policy_network_forward(state, kernel_params, block_b=BLOCK_B):
    """state: [B, 15] float32.  kernel_params: flat tuple of 24 padded arrays."""
    B = state.shape[0]
    n_blocks = pl.cdiv(B, block_b)
    B_pad = n_blocks * block_b

    # Batch-on-lanes input slab (features_pad, batch_pad) — layout plumbing only.
    xt = jnp.zeros((IN_PAD0, B_pad), jnp.float32).at[:STATE_DIM, :B].set(
        state.astype(jnp.float32).T)

    # x / out tiles move with the batch grid; every param uses a constant
    # index_map so its single block stays resident in VMEM across grid steps.
    in_specs = [pl.BlockSpec((IN_PAD0, block_b), lambda i: (0, i))]
    for prm in kernel_params:
        in_specs.append(pl.BlockSpec(prm.shape, lambda i: (0, 0)))
    out_spec = pl.BlockSpec((OUT_PAD, block_b), lambda i: (0, i))

    flops = 2 * B_pad * sum(o * i for o, i in PADDED_SIZES)
    param_bytes = 4 * sum(int(prm.size) for prm in kernel_params)
    cost = pl.CostEstimate(
        flops=int(flops),
        transcendentals=int(OUT_PAD * B_pad),
        bytes_accessed=int(4 * (IN_PAD0 + OUT_PAD) * B_pad + param_bytes))

    out = pl.pallas_call(
        policy_mlp_kernel,
        out_shape=jax.ShapeDtypeStruct((OUT_PAD, B_pad), jnp.float32),
        grid=(n_blocks,),
        in_specs=in_specs,
        out_specs=out_spec,
        compiler_params=pltpu.CompilerParams(
            dimension_semantics=("parallel",)),   # v7x: shard batch over both TCs
        cost_estimate=cost,
    )(xt, *kernel_params)

    # Row 0 of the lane-dense slab holds the action per batch column.
    return out[0, :B].reshape(B, 1)


# ----------------------------------------------------------------------------
# Deterministic NoisyLayer parameter construction (plain-JAX setup glue)
# ----------------------------------------------------------------------------
def _scale_noise(eps):
    return jnp.sign(eps) * jnp.sqrt(jnp.abs(eps))


def make_noisy_layer(key, in_features, out_features, sigma_init=0.5):
    """Raw NoisyLayer components in PyTorch orientation (weight [out, in])."""
    k_mu_w, k_mu_b, k_eps_in, k_eps_out = jax.random.split(key, 4)
    bound = 1.0 / math.sqrt(in_features)
    sig = sigma_init / math.sqrt(in_features)

    w_mu = jax.random.uniform(k_mu_w, (out_features, in_features),
                              minval=-bound, maxval=bound, dtype=jnp.float32)
    b_mu = jax.random.uniform(k_mu_b, (out_features,),
                              minval=-bound, maxval=bound, dtype=jnp.float32)
    w_sigma = jnp.full((out_features, in_features), sig, dtype=jnp.float32)
    b_sigma = jnp.full((out_features,), sig, dtype=jnp.float32)

    eps_in = _scale_noise(jax.random.normal(k_eps_in, (in_features,), dtype=jnp.float32))
    eps_out = _scale_noise(jax.random.normal(k_eps_out, (out_features,), dtype=jnp.float32))

    return dict(w_mu=w_mu, w_sigma=w_sigma, b_mu=b_mu, b_sigma=b_sigma,
                eps_in=eps_in, eps_out=eps_out)


def make_policy_params(key):
    keys = jax.random.split(key, len(LAYER_SIZES))
    return [make_noisy_layer(k, fi, fo) for k, (fi, fo) in zip(keys, LAYER_SIZES)]


def pad_layer_for_kernel(layer, out_pad, in_pad):
    """Zero-pad to (out_pad, in_pad), keeping the PyTorch [out, in] orientation."""
    out_f, in_f = layer["w_mu"].shape
    wmu = jnp.zeros((out_pad, in_pad), jnp.float32).at[:out_f, :in_f].set(layer["w_mu"])
    wsg = jnp.zeros((out_pad, in_pad), jnp.float32).at[:out_f, :in_f].set(layer["w_sigma"])
    bmu = jnp.zeros((out_pad, 1), jnp.float32).at[:out_f, 0].set(layer["b_mu"])
    bsg = jnp.zeros((out_pad, 1), jnp.float32).at[:out_f, 0].set(layer["b_sigma"])
    ei = jnp.zeros((1, in_pad), jnp.float32).at[0, :in_f].set(layer["eps_in"])
    eo = jnp.zeros((out_pad, 1), jnp.float32).at[:out_f, 0].set(layer["eps_out"])
    return (wmu, wsg, bmu, bsg, ei, eo)


def pack_kernel_params(layers):
    flat = []
    for layer, (out_pad, in_pad) in zip(layers, PADDED_SIZES):
        flat.extend(pad_layer_for_kernel(layer, out_pad, in_pad))
    return tuple(flat)


# ----------------------------------------------------------------------------
# Pure-JAX reference for correctness check (unpadded math)
# ----------------------------------------------------------------------------
def reference_forward(state, layers):
    h = state
    for i, L in enumerate(layers):
        eps_w = jnp.outer(L["eps_out"], L["eps_in"])
        w = L["w_mu"] + L["w_sigma"] * eps_w
        b = L["b_mu"] + L["b_sigma"] * L["eps_out"]
        h = h @ w.T + b
        h = jnp.maximum(h, 0.0) if i < 3 else jnp.tanh(h)
    return h


if __name__ == "__main__":
    key = jax.random.PRNGKey(0)
    k_params, k_state = jax.random.split(key)

    layers = make_policy_params(k_params)
    kernel_params = pack_kernel_params(layers)

    # Two 128-column grid steps: exercises the batch pipeline / megacore split
    # while staying tiny (weights ~300 KB VMEM-resident, 8 KB x-tile, 4 KB out-tile).
    batch = 256
    state = jax.random.normal(k_state, (batch, STATE_DIM), dtype=jnp.float32)

    fwd = jax.jit(functools.partial(policy_network_forward, block_b=BLOCK_B))
    action = jax.block_until_ready(fwd(state, kernel_params))

    ref = reference_forward(state, layers)
    assert action.shape == (batch, 1), action.shape
    tol = 2e-2 if USE_BF16_MATMUL else 1e-5
    err = float(jnp.max(jnp.abs(action - ref)))
    assert jnp.allclose(action, ref, atol=tol, rtol=tol), err

    print("KERNEL_OK")
</pallas_src>

<mosaic_0001>
module attributes {stable_mosaic.version = 11 : i64} {
  func.func @policy_mlp_kernel(%arg0: i32, %arg1: memref<16x128xf32, #tpu.memory_space<vmem>>, %arg2: memref<128x16xf32, #tpu.memory_space<vmem>>, %arg3: memref<128x16xf32, #tpu.memory_space<vmem>>, %arg4: memref<128x1xf32, #tpu.memory_space<vmem>>, %arg5: memref<128x1xf32, #tpu.memory_space<vmem>>, %arg6: memref<1x16xf32, #tpu.memory_space<vmem>>, %arg7: memref<128x1xf32, #tpu.memory_space<vmem>>, %arg8: memref<128x128xf32, #tpu.memory_space<vmem>>, %arg9: memref<128x128xf32, #tpu.memory_space<vmem>>, %arg10: memref<128x1xf32, #tpu.memory_space<vmem>>, %arg11: memref<128x1xf32, #tpu.memory_space<vmem>>, %arg12: memref<1x128xf32, #tpu.memory_space<vmem>>, %arg13: memref<128x1xf32, #tpu.memory_space<vmem>>, %arg14: memref<128x128xf32, #tpu.memory_space<vmem>>, %arg15: memref<128x128xf32, #tpu.memory_space<vmem>>, %arg16: memref<128x1xf32, #tpu.memory_space<vmem>>, %arg17: memref<128x1xf32, #tpu.memory_space<vmem>>, %arg18: memref<1x128xf32, #tpu.memory_space<vmem>>, %arg19: memref<128x1xf32, #tpu.memory_space<vmem>>, %arg20: memref<8x128xf32, #tpu.memory_space<vmem>>, %arg21: memref<8x128xf32, #tpu.memory_space<vmem>>, %arg22: memref<8x1xf32, #tpu.memory_space<vmem>>, %arg23: memref<8x1xf32, #tpu.memory_space<vmem>>, %arg24: memref<1x128xf32, #tpu.memory_space<vmem>>, %arg25: memref<8x1xf32, #tpu.memory_space<vmem>>, %arg26: memref<8x128xf32, #tpu.memory_space<vmem>>) attributes {dimension_semantics = [#tpu.dimension_semantics<parallel>], iteration_bounds = array<i64: 2>, scalar_prefetch = 0 : i64, scratch_operands = 0 : i64, tpu.core_type = #tpu.core_type<tc>, window_params = [{transform_indices = @transform_0, window_bounds = array<i64: 16, 128>}, {pipeline_mode = #tpu.pipeline_mode<synchronous>, transform_indices = @transform_1, window_bounds = array<i64: 128, 16>}, {pipeline_mode = #tpu.pipeline_mode<synchronous>, transform_indices = @transform_2, window_bounds = array<i64: 128, 16>}, {pipeline_mode = #tpu.pipeline_mode<synchronous>, transform_indices = @transform_3, window_bounds = array<i64: 128, 1>}, {pipeline_mode = #tpu.pipeline_mode<synchronous>, transform_indices = @transform_4, window_bounds = array<i64: 128, 1>}, {pipeline_mode = #tpu.pipeline_mode<synchronous>, transform_indices = @transform_5, window_bounds = array<i64: 1, 16>}, {pipeline_mode = #tpu.pipeline_mode<synchronous>, transform_indices = @transform_6, window_bounds = array<i64: 128, 1>}, {pipeline_mode = #tpu.pipeline_mode<synchronous>, transform_indices = @transform_7, window_bounds = array<i64: 128, 128>}, {pipeline_mode = #tpu.pipeline_mode<synchronous>, transform_indices = @transform_8, window_bounds = array<i64: 128, 128>}, {pipeline_mode = #tpu.pipeline_mode<synchronous>, transform_indices = @transform_9, window_bounds = array<i64: 128, 1>}, {pipeline_mode = #tpu.pipeline_mode<synchronous>, transform_indices = @transform_10, window_bounds = array<i64: 128, 1>}, {pipeline_mode = #tpu.pipeline_mode<synchronous>, transform_indices = @transform_11, window_bounds = array<i64: 1, 128>}, {pipeline_mode = #tpu.pipeline_mode<synchronous>, transform_indices = @transform_12, window_bounds = array<i64: 128, 1>}, {pipeline_mode = #tpu.pipeline_mode<synchronous>, transform_indices = @transform_13, window_bounds = array<i64: 128, 128>}, {pipeline_mode = #tpu.pipeline_mode<synchronous>, transform_indices = @transform_14, window_bounds = array<i64: 128, 128>}, {pipeline_mode = #tpu.pipeline_mode<synchronous>, transform_indices = @transform_15, window_bounds = array<i64: 128, 1>}, {pipeline_mode = #tpu.pipeline_mode<synchronous>, transform_indices = @transform_16, window_bounds = array<i64: 128, 1>}, {pipeline_mode = #tpu.pipeline_mode<synchronous>, transform_indices = @transform_17, window_bounds = array<i64: 1, 128>}, {pipeline_mode = #tpu.pipeline_mode<synchronous>, transform_indices = @transform_18, window_bounds = array<i64: 128, 1>}, {pipeline_mode = #tpu.pipeline_mode<synchronous>, transform_indices = @transform_19, window_bounds = array<i64: 8, 128>}, {pipeline_mode = #tpu.pipeline_mode<synchronous>, transform_indices = @transform_20, window_bounds = array<i64: 8, 128>}, {pipeline_mode = #tpu.pipeline_mode<synchronous>, transform_indices = @transform_21, window_bounds = array<i64: 8, 1>}, {pipeline_mode = #tpu.pipeline_mode<synchronous>, transform_indices = @transform_22, window_bounds = array<i64: 8, 1>}, {pipeline_mode = #tpu.pipeline_mode<synchronous>, transform_indices = @transform_23, window_bounds = array<i64: 1, 128>}, {pipeline_mode = #tpu.pipeline_mode<synchronous>, transform_indices = @transform_24, window_bounds = array<i64: 8, 1>}, {transform_indices = @transform_25, window_bounds = array<i64: 8, 128>}]} {
    %c0 = arith.constant 0 : index
    %c0_0 = arith.constant 0 : index
    %0 = vector.load %arg1[%c0, %c0_0] : memref<16x128xf32, #tpu.memory_space<vmem>>, vector<16x128xf32>
    %c0_1 = arith.constant 0 : index
    %c0_2 = arith.constant 0 : index
    %1 = vector.load %arg2[%c0_1, %c0_2] : memref<128x16xf32, #tpu.memory_space<vmem>>, vector<128x16xf32>
    %c0_3 = arith.constant 0 : index
    %c0_4 = arith.constant 0 : index
    %2 = vector.load %arg3[%c0_3, %c0_4] : memref<128x16xf32, #tpu.memory_space<vmem>>, vector<128x16xf32>
    %c0_5 = arith.constant 0 : index
    %c0_6 = arith.constant 0 : index
    %3 = vector.load %arg7[%c0_5, %c0_6] : memref<128x1xf32, #tpu.memory_space<vmem>>, vector<128x1xf32>
    %c0_7 = arith.constant 0 : index
    %c0_8 = arith.constant 0 : index
    %4 = vector.load %arg6[%c0_7, %c0_8] : memref<1x16xf32, #tpu.memory_space<vmem>>, vector<1x16xf32>
    %5 = vector.broadcast %3 : vector<128x1xf32> to vector<128x16xf32>
    %6 = vector.broadcast %4 : vector<1x16xf32> to vector<128x16xf32>
    %7 = arith.mulf %5, %6 : vector<128x16xf32>
    %8 = arith.mulf %2, %7 : vector<128x16xf32>
    %9 = arith.addf %1, %8 : vector<128x16xf32>
    %c0_9 = arith.constant 0 : index
    %c0_10 = arith.constant 0 : index
    %10 = vector.load %arg4[%c0_9, %c0_10] : memref<128x1xf32, #tpu.memory_space<vmem>>, vector<128x1xf32>
    %c0_11 = arith.constant 0 : index
    %c0_12 = arith.constant 0 : index
    %11 = vector.load %arg5[%c0_11, %c0_12] : memref<128x1xf32, #tpu.memory_space<vmem>>, vector<128x1xf32>
    %c0_13 = arith.constant 0 : index
    %c0_14 = arith.constant 0 : index
    %12 = vector.load %arg7[%c0_13, %c0_14] : memref<128x1xf32, #tpu.memory_space<vmem>>, vector<128x1xf32>
    %13 = arith.mulf %11, %12 : vector<128x1xf32>
    %14 = arith.addf %10, %13 : vector<128x1xf32>
    %cst = arith.constant dense<0.000000e+00> : vector<128x128xf32>
    %15 = tpu.matmul %9, %0, %cst {dimension_numbers = #tpu.dot_dimension_numbers<[1], [0], [0], [1], [0, 0, 1, 1], [], []>} : vector<128x16xf32>, vector<16x128xf32>, vector<128x128xf32> -> vector<128x128xf32>
    %16 = vector.broadcast %14 : vector<128x1xf32> to vector<128x128xf32>
    %17 = arith.addf %15, %16 : vector<128x128xf32>
    %cst_15 = arith.constant 0.000000e+00 : f32
    %18 = vector.broadcast %cst_15 : f32 to vector<128x128xf32>
    %19 = arith.maximumf %17, %18 : vector<128x128xf32>
    %c0_16 = arith.constant 0 : index
    %c0_17 = arith.constant 0 : index
    %20 = vector.load %arg8[%c0_16, %c0_17] : memref<128x128xf32, #tpu.memory_space<vmem>>, vector<128x128xf32>
    %c0_18 = arith.constant 0 : index
    %c0_19 = arith.constant 0 : index
    %21 = vector.load %arg9[%c0_18, %c0_19] : memref<128x128xf32, #tpu.memory_space<vmem>>, vector<128x128xf32>
    %c0_20 = arith.constant 0 : index
    %c0_21 = arith.constant 0 : index
    %22 = vector.load %arg13[%c0_20, %c0_21] : memref<128x1xf32, #tpu.memory_space<vmem>>, vector<128x1xf32>
    %c0_22 = arith.constant 0 : index
    %c0_23 = arith.constant 0 : index
    %23 = vector.load %arg12[%c0_22, %c0_23] : memref<1x128xf32, #tpu.memory_space<vmem>>, vector<1x128xf32>
    %24 = vector.broadcast %22 : vector<128x1xf32> to vector<128x128xf32>
    %25 = vector.broadcast %23 : vector<1x128xf32> to vector<128x128xf32>
    %26 = arith.mulf %24, %25 : vector<128x128xf32>
    %27 = arith.mulf %21, %26 : vector<128x128xf32>
    %28 = arith.addf %20, %27 : vector<128x128xf32>
    %c0_24 = arith.constant 0 : index
    %c0_25 = arith.constant 0 : index
    %29 = vector.load %arg10[%c0_24, %c0_25] : memref<128x1xf32, #tpu.memory_space<vmem>>, vector<128x1xf32>
    %c0_26 = arith.constant 0 : index
    %c0_27 = arith.constant 0 : index
    %30 = vector.load %arg11[%c0_26, %c0_27] : memref<128x1xf32, #tpu.memory_space<vmem>>, vector<128x1xf32>
    %c0_28 = arith.constant 0 : index
    %c0_29 = arith.constant 0 : index
    %31 = vector.load %arg13[%c0_28, %c0_29] : memref<128x1xf32, #tpu.memory_space<vmem>>, vector<128x1xf32>
    %32 = arith.mulf %30, %31 : vector<128x1xf32>
    %33 = arith.addf %29, %32 : vector<128x1xf32>
    %cst_30 = arith.constant dense<0.000000e+00> : vector<128x128xf32>
    %34 = tpu.matmul %28, %19, %cst_30 {dimension_numbers = #tpu.dot_dimension_numbers<[1], [0], [0], [1], [0, 0, 1, 1], [], []>} : vector<128x128xf32>, vector<128x128xf32>, vector<128x128xf32> -> vector<128x128xf32>
    %35 = vector.broadcast %33 : vector<128x1xf32> to vector<128x128xf32>
    %36 = arith.addf %34, %35 : vector<128x128xf32>
    %cst_31 = arith.constant 0.000000e+00 : f32
    %37 = vector.broadcast %cst_31 : f32 to vector<128x128xf32>
    %38 = arith.maximumf %36, %37 : vector<128x128xf32>
    %c0_32 = arith.constant 0 : index
    %c0_33 = arith.constant 0 : index
    %39 = vector.load %arg14[%c0_32, %c0_33] : memref<128x128xf32, #tpu.memory_space<vmem>>, vector<128x128xf32>
    %c0_34 = arith.constant 0 : index
    %c0_35 = arith.constant 0 : index
    %40 = vector.load %arg15[%c0_34, %c0_35] : memref<128x128xf32, #tpu.memory_space<vmem>>, vector<128x128xf32>
    %c0_36 = arith.constant 0 : index
    %c0_37 = arith.constant 0 : index
    %41 = vector.load %arg19[%c0_36, %c0_37] : memref<128x1xf32, #tpu.memory_space<vmem>>, vector<128x1xf32>
    %c0_38 = arith.constant 0 : index
    %c0_39 = arith.constant 0 : index
    %42 = vector.load %arg18[%c0_38, %c0_39] : memref<1x128xf32, #tpu.memory_space<vmem>>, vector<1x128xf32>
    %43 = vector.broadcast %41 : vector<128x1xf32> to vector<128x128xf32>
    %44 = vector.broadcast %42 : vector<1x128xf32> to vector<128x128xf32>
    %45 = arith.mulf %43, %44 : vector<128x128xf32>
    %46 = arith.mulf %40, %45 : vector<128x128xf32>
    %47 = arith.addf %39, %46 : vector<128x128xf32>
    %c0_40 = arith.constant 0 : index
    %c0_41 = arith.constant 0 : index
    %48 = vector.load %arg16[%c0_40, %c0_41] : memref<128x1xf32, #tpu.memory_space<vmem>>, vector<128x1xf32>
    %c0_42 = arith.constant 0 : index
    %c0_43 = arith.constant 0 : index
    %49 = vector.load %arg17[%c0_42, %c0_43] : memref<128x1xf32, #tpu.memory_space<vmem>>, vector<128x1xf32>
    %c0_44 = arith.constant 0 : index
    %c0_45 = arith.constant 0 : index
    %50 = vector.load %arg19[%c0_44, %c0_45] : memref<128x1xf32, #tpu.memory_space<vmem>>, vector<128x1xf32>
    %51 = arith.mulf %49, %50 : vector<128x1xf32>
    %52 = arith.addf %48, %51 : vector<128x1xf32>
    %cst_46 = arith.constant dense<0.000000e+00> : vector<128x128xf32>
    %53 = tpu.matmul %47, %38, %cst_46 {dimension_numbers = #tpu.dot_dimension_numbers<[1], [0], [0], [1], [0, 0, 1, 1], [], []>} : vector<128x128xf32>, vector<128x128xf32>, vector<128x128xf32> -> vector<128x128xf32>
    %54 = vector.broadcast %52 : vector<128x1xf32> to vector<128x128xf32>
    %55 = arith.addf %53, %54 : vector<128x128xf32>
    %cst_47 = arith.constant 0.000000e+00 : f32
    %56 = vector.broadcast %cst_47 : f32 to vector<128x128xf32>
    %57 = arith.maximumf %55, %56 : vector<128x128xf32>
    %c0_48 = arith.constant 0 : index
    %c0_49 = arith.constant 0 : index
    %58 = vector.load %arg20[%c0_48, %c0_49] : memref<8x128xf32, #tpu.memory_space<vmem>>, vector<8x128xf32>
    %c0_50 = arith.constant 0 : index
    %c0_51 = arith.constant 0 : index
    %59 = vector.load %arg21[%c0_50, %c0_51] : memref<8x128xf32, #tpu.memory_space<vmem>>, vector<8x128xf32>
    %c0_52 = arith.constant 0 : index
    %c0_53 = arith.constant 0 : index
    %60 = vector.load %arg25[%c0_52, %c0_53] : memref<8x1xf32, #tpu.memory_space<vmem>>, vector<8x1xf32>
    %c0_54 = arith.constant 0 : index
    %c0_55 = arith.constant 0 : index
    %61 = vector.load %arg24[%c0_54, %c0_55] : memref<1x128xf32, #tpu.memory_space<vmem>>, vector<1x128xf32>
    %62 = vector.broadcast %60 : vector<8x1xf32> to vector<8x128xf32>
    %63 = vector.broadcast %61 : vector<1x128xf32> to vector<8x128xf32>
    %64 = arith.mulf %62, %63 : vector<8x128xf32>
    %65 = arith.mulf %59, %64 : vector<8x128xf32>
    %66 = arith.addf %58, %65 : vector<8x128xf32>
    %c0_56 = arith.constant 0 : index
    %c0_57 = arith.constant 0 : index
    %67 = vector.load %arg22[%c0_56, %c0_57] : memref<8x1xf32, #tpu.memory_space<vmem>>, vector<8x1xf32>
    %c0_58 = arith.constant 0 : index
    %c0_59 = arith.constant 0 : index
    %68 = vector.load %arg23[%c0_58, %c0_59] : memref<8x1xf32, #tpu.memory_space<vmem>>, vector<8x1xf32>
    %c0_60 = arith.constant 0 : index
    %c0_61 = arith.constant 0 : index
    %69 = vector.load %arg25[%c0_60, %c0_61] : memref<8x1xf32, #tpu.memory_space<vmem>>, vector<8x1xf32>
    %70 = arith.mulf %68, %69 : vector<8x1xf32>
    %71 = arith.addf %67, %70 : vector<8x1xf32>
    %cst_62 = arith.constant dense<0.000000e+00> : vector<8x128xf32>
    %72 = tpu.matmul %66, %57, %cst_62 {dimension_numbers = #tpu.dot_dimension_numbers<[1], [0], [0], [1], [0, 0, 1, 1], [], []>} : vector<8x128xf32>, vector<128x128xf32>, vector<8x128xf32> -> vector<8x128xf32>
    %73 = vector.broadcast %71 : vector<8x1xf32> to vector<8x128xf32>
    %74 = arith.addf %72, %73 : vector<8x128xf32>
    %75 = math.tanh %74 : vector<8x128xf32>
    %c0_63 = arith.constant 0 : index
    %c0_64 = arith.constant 0 : index
    %76 = vector.load %arg26[%c0_63, %c0_64] : memref<8x128xf32, #tpu.memory_space<vmem>>, vector<8x128xf32>
    tpu.vector_store %arg26[%c0_63, %c0_64], %75 {strides = array<i32>} : memref<8x128xf32, #tpu.memory_space<vmem>>, vector<8x128xf32>,
    return
  }
  func.func @transform_0(%arg0: i32) -> (i32, i32) {
    %c0_i32 = arith.constant 0 : i32
    %c0_i32_0 = arith.constant 0 : i32
    return %c0_i32, %arg0 : i32, i32
  }
  func.func @transform_1(%arg0: i32) -> (i32, i32) {
    %c0_i32 = arith.constant 0 : i32
    %c0_i32_0 = arith.constant 0 : i32
    %c0_i32_1 = arith.constant 0 : i32
    return %c0_i32, %c0_i32_0 : i32, i32
  }
  func.func @transform_2(%arg0: i32) -> (i32, i32) {
    %c0_i32 = arith.constant 0 : i32
    %c0_i32_0 = arith.constant 0 : i32
    %c0_i32_1 = arith.constant 0 : i32
    return %c0_i32, %c0_i32_0 : i32, i32
  }
  func.func @transform_3(%arg0: i32) -> (i32, i32) {
    %c0_i32 = arith.constant 0 : i32
    %c0_i32_0 = arith.constant 0 : i32
    %c0_i32_1 = arith.constant 0 : i32
    return %c0_i32, %c0_i32_0 : i32, i32
  }
  func.func @transform_4(%arg0: i32) -> (i32, i32) {
    %c0_i32 = arith.constant 0 : i32
    %c0_i32_0 = arith.constant 0 : i32
    %c0_i32_1 = arith.constant 0 : i32
    return %c0_i32, %c0_i32_0 : i32, i32
  }
  func.func @transform_5(%arg0: i32) -> (i32, i32) {
    %c0_i32 = arith.constant 0 : i32
    %c0_i32_0 = arith.constant 0 : i32
    %c0_i32_1 = arith.constant 0 : i32
    return %c0_i32, %c0_i32_0 : i32, i32
  }
  func.func @transform_6(%arg0: i32) -> (i32, i32) {
    %c0_i32 = arith.constant 0 : i32
    %c0_i32_0 = arith.constant 0 : i32
    %c0_i32_1 = arith.constant 0 : i32
    return %c0_i32, %c0_i32_0 : i32, i32
  }
  func.func @transform_7(%arg0: i32) -> (i32, i32) {
    %c0_i32 = arith.constant 0 : i32
    %c0_i32_0 = arith.constant 0 : i32
    %c0_i32_1 = arith.constant 0 : i32
    return %c0_i32, %c0_i32_0 : i32, i32
  }
  func.func @transform_8(%arg0: i32) -> (i32, i32) {
    %c0_i32 = arith.constant 0 : i32
    %c0_i32_0 = arith.constant 0 : i32
    %c0_i32_1 = arith.constant 0 : i32
    return %c0_i32, %c0_i32_0 : i32, i32
  }
  func.func @transform_9(%arg0: i32) -> (i32, i32) {
    %c0_i32 = arith.constant 0 : i32
    %c0_i32_0 = arith.constant 0 : i32
    %c0_i32_1 = arith.constant 0 : i32
    return %c0_i32, %c0_i32_0 : i32, i32
  }
  func.func @transform_10(%arg0: i32) -> (i32, i32) {
    %c0_i32 = arith.constant 0 : i32
    %c0_i32_0 = arith.constant 0 : i32
    %c0_i32_1 = arith.constant 0 : i32
    return %c0_i32, %c0_i32_0 : i32, i32
  }
  func.func @transform_11(%arg0: i32) -> (i32, i32) {
    %c0_i32 = arith.constant 0 : i32
    %c0_i32_0 = arith.constant 0 : i32
    %c0_i32_1 = arith.constant 0 : i32
    return %c0_i32, %c0_i32_0 : i32, i32
  }
  func.func @transform_12(%arg0: i32) -> (i32, i32) {
    %c0_i32 = arith.constant 0 : i32
    %c0_i32_0 = arith.constant 0 : i32
    %c0_i32_1 = arith.constant 0 : i32
    return %c0_i32, %c0_i32_0 : i32, i32
  }
  func.func @transform_13(%arg0: i32) -> (i32, i32) {
    %c0_i32 = arith.constant 0 : i32
    %c0_i32_0 = arith.constant 0 : i32
    %c0_i32_1 = arith.constant 0 : i32
    return %c0_i32, %c0_i32_0 : i32, i32
  }
  func.func @transform_14(%arg0: i32) -> (i32, i32) {
    %c0_i32 = arith.constant 0 : i32
    %c0_i32_0 = arith.constant 0 : i32
    %c0_i32_1 = arith.constant 0 : i32
    return %c0_i32, %c0_i32_0 : i32, i32
  }
  func.func @transform_15(%arg0: i32) -> (i32, i32) {
    %c0_i32 = arith.constant 0 : i32
    %c0_i32_0 = arith.constant 0 : i32
    %c0_i32_1 = arith.constant 0 : i32
    return %c0_i32, %c0_i32_0 : i32, i32
  }
  func.func @transform_16(%arg0: i32) -> (i32, i32) {
    %c0_i32 = arith.constant 0 : i32
    %c0_i32_0 = arith.constant 0 : i32
    %c0_i32_1 = arith.constant 0 : i32
    return %c0_i32, %c0_i32_0 : i32, i32
  }
  func.func @transform_17(%arg0: i32) -> (i32, i32) {
    %c0_i32 = arith.constant 0 : i32
    %c0_i32_0 = arith.constant 0 : i32
    %c0_i32_1 = arith.constant 0 : i32
    return %c0_i32, %c0_i32_0 : i32, i32
  }
  func.func @transform_18(%arg0: i32) -> (i32, i32) {
    %c0_i32 = arith.constant 0 : i32
    %c0_i32_0 = arith.constant 0 : i32
    %c0_i32_1 = arith.constant 0 : i32
    return %c0_i32, %c0_i32_0 : i32, i32
  }
  func.func @transform_19(%arg0: i32) -> (i32, i32) {
    %c0_i32 = arith.constant 0 : i32
    %c0_i32_0 = arith.constant 0 : i32
    %c0_i32_1 = arith.constant 0 : i32
    return %c0_i32, %c0_i32_0 : i32, i32
  }
  func.func @transform_20(%arg0: i32) -> (i32, i32) {
    %c0_i32 = arith.constant 0 : i32
    %c0_i32_0 = arith.constant 0 : i32
    %c0_i32_1 = arith.constant 0 : i32
    return %c0_i32, %c0_i32_0 : i32, i32
  }
  func.func @transform_21(%arg0: i32) -> (i32, i32) {
    %c0_i32 = arith.constant 0 : i32
    %c0_i32_0 = arith.constant 0 : i32
    %c0_i32_1 = arith.constant 0 : i32
    return %c0_i32, %c0_i32_0 : i32, i32
  }
  func.func @transform_22(%arg0: i32) -> (i32, i32) {
    %c0_i32 = arith.constant 0 : i32
    %c0_i32_0 = arith.constant 0 : i32
    %c0_i32_1 = arith.constant 0 : i32
    return %c0_i32, %c0_i32_0 : i32, i32
  }
  func.func @transform_23(%arg0: i32) -> (i32, i32) {
    %c0_i32 = arith.constant 0 : i32
    %c0_i32_0 = arith.constant 0 : i32
    %c0_i32_1 = arith.constant 0 : i32
    return %c0_i32, %c0_i32_0 : i32, i32
  }
  func.func @transform_24(%arg0: i32) -> (i32, i32) {
    %c0_i32 = arith.constant 0 : i32
    %c0_i32_0 = arith.constant 0 : i32
    %c0_i32_1 = arith.constant 0 : i32
    return %c0_i32, %c0_i32_0 : i32, i32
  }
  func.func @transform_25(%arg0: i32) -> (i32, i32) {
    %c0_i32 = arith.constant 0 : i32
    %c0_i32_0 = arith.constant 0 : i32
    return %c0_i32, %arg0 : i32, i32
  }
}

</mosaic_0001>

<llo_original>
// kernel: policy_network_forward.1
$region0: #{policy_network_forward.1}
  #allocation0 [shape = 'u32[]', space=smem, size = 0x4, offset = 0x4, fixed_abs, tag = 'smem constant byte address 0x4 - core index']
  #allocation1 [shape = 'u32[72,128]{1,0:T(1,128)}', space=vmem, size = 0x9000, scoped, tag = 'internal scratch']
  %s0 = inlined_call_operand.vmem [shape: f32[16,256], index: 0, kind: input, shape index: {}]
  %s1 = inlined_call_operand.vmem [shape: f32[128,16], index: 1, kind: input, shape index: {}]
  %s2 = inlined_call_operand.vmem [shape: f32[128,16], index: 2, kind: input, shape index: {}]
  %s3 = inlined_call_operand.vmem [shape: f32[128,1], index: 3, kind: input, shape index: {}]
  %s4 = inlined_call_operand.vmem [shape: f32[128,1], index: 4, kind: input, shape index: {}]
  %s5 = inlined_call_operand.vmem [shape: f32[1,16], index: 5, kind: input, shape index: {}]
  %s6 = inlined_call_operand.vmem [shape: f32[128,1], index: 6, kind: input, shape index: {}]
  %s7 = inlined_call_operand.vmem [shape: f32[128,128], index: 7, kind: input, shape index: {}]
  %s8 = inlined_call_operand.vmem [shape: f32[128,128], index: 8, kind: input, shape index: {}]
  %s9 = inlined_call_operand.vmem [shape: f32[128,1], index: 9, kind: input, shape index: {}]
  %s10 = inlined_call_operand.vmem [shape: f32[128,1], index: 10, kind: input, shape index: {}]
  %s11 = inlined_call_operand.vmem [shape: f32[1,128], index: 11, kind: input, shape index: {}]
  %s12 = inlined_call_operand.vmem [shape: f32[128,1], index: 12, kind: input, shape index: {}]
  %s13 = inlined_call_operand.vmem [shape: f32[128,128], index: 13, kind: input, shape index: {}]
  %s14 = inlined_call_operand.vmem [shape: f32[128,128], index: 14, kind: input, shape index: {}]
  %s15 = inlined_call_operand.vmem [shape: f32[128,1], index: 15, kind: input, shape index: {}]
  %s16 = inlined_call_operand.vmem [shape: f32[128,1], index: 16, kind: input, shape index: {}]
  %s17 = inlined_call_operand.vmem [shape: f32[1,128], index: 17, kind: input, shape index: {}]
  %s18 = inlined_call_operand.vmem [shape: f32[128,1], index: 18, kind: input, shape index: {}]
  %s19 = inlined_call_operand.vmem [shape: f32[8,128], index: 19, kind: input, shape index: {}]
  %s20 = inlined_call_operand.vmem [shape: f32[8,128], index: 20, kind: input, shape index: {}]
  %s21 = inlined_call_operand.vmem [shape: f32[8,1], index: 21, kind: input, shape index: {}]
  %s22 = inlined_call_operand.vmem [shape: f32[8,1], index: 22, kind: input, shape index: {}]
  %s23 = inlined_call_operand.vmem [shape: f32[1,128], index: 23, kind: input, shape index: {}]
  %s24 = inlined_call_operand.vmem [shape: f32[8,1], index: 24, kind: input, shape index: {}]
  %s25 = inlined_call_operand.vmem [shape: f32[8,256], index: 25, kind: output, shape index: {}]
  %s26 = sld [smem:[#allocation0]]
  $region171: #{policy_network_forward.1} parent=0
    _
  %s28 = ssub.s32 1, %s26
  %s29 = scalar_select 0, %s28, %s26
  $region1: #{policy_network_forward.1} parent=0
    #allocation2 [shape = 'u8[16384]{0}', space=vmem, size = 0x4000, scoped, tag = 'input window, operand 0']
    loop: start=0, step=1, limit=4
    $region2: #{policy_network_forward.1} parent=1 // loop_pre_header
      _
    $region3: #{policy_network_forward.1} parent=1 // loop_header
      %s31 = sphi 0, %s35
      %p32 = scmp.ge.s32.totalorder %s31, 4
      %s41 = sphi 0, %s43
      %s44 = sphi 0, %s41
      %s45 = sphi 0, %s44
      %s61 = sphi 0, %s45
      %s65 = sphi 0, %s65
      %s67 = sphi 0, %s65
      %s68 = sphi 0, %s67
      %s82 = sphi 0, %s68
      %s86 = sphi 0, %s86
      %s88 = sphi 0, %s86
      %s89 = sphi 0, %s88
      %s103 = sphi 0, %s89
      %s107 = sphi 0, %s107
      %s109 = sphi 0, %s107
      %s110 = sphi 0, %s109
      %s124 = sphi 0, %s110
      %s128 = sphi 0, %s128
      %s130 = sphi 0, %s128
      %s131 = sphi 0, %s130
      %s145 = sphi 0, %s131
      %s149 = sphi 0, %s149
      %s151 = sphi 0, %s149
      %s152 = sphi 0, %s151
      %s166 = sphi 0, %s152
      %s170 = sphi 0, %s170
      %s172 = sphi 0, %s170
      %s173 = sphi 0, %s172
      %s187 = sphi 0, %s173
      %s191 = sphi 0, %s191
      %s193 = sphi 0, %s191
      %s194 = sphi 0, %s193
      %s208 = sphi 0, %s194
      %s212 = sphi 0, %s212
      %s214 = sphi 0, %s212
      %s215 = sphi 0, %s214
      %s229 = sphi 0, %s215
      %s233 = sphi 0, %s233
      %s235 = sphi 0, %s233
      %s236 = sphi 0, %s235
      %s250 = sphi 0, %s236
      %s254 = sphi 0, %s254
      %s256 = sphi 0, %s254
      %s257 = sphi 0, %s256
      %s271 = sphi 0, %s257
      %s275 = sphi 0, %s275
      %s277 = sphi 0, %s275
      %s278 = sphi 0, %s277
      %s292 = sphi 0, %s278
      %s296 = sphi 0, %s296
      %s298 = sphi 0, %s296
      %s299 = sphi 0, %s298
      %s313 = sphi 0, %s299
      %s317 = sphi 0, %s317
      %s319 = sphi 0, %s317
      %s320 = sphi 0, %s319
      %s334 = sphi 0, %s320
      %s338 = sphi 0, %s338
      %s340 = sphi 0, %s338
      %s341 = sphi 0, %s340
      %s355 = sphi 0, %s341
      %s359 = sphi 0, %s359
      %s361 = sphi 0, %s359
      %s362 = sphi 0, %s361
      %s376 = sphi 0, %s362
      %s380 = sphi 0, %s380
      %s382 = sphi 0, %s380
      %s383 = sphi 0, %s382
      %s397 = sphi 0, %s383
      %s401 = sphi 0, %s401
      %s403 = sphi 0, %s401
      %s404 = sphi 0, %s403
      %s418 = sphi 0, %s404
      %s422 = sphi 0, %s422
      %s424 = sphi 0, %s422
      %s425 = sphi 0, %s424
      %s439 = sphi 0, %s425
      %s443 = sphi 0, %s443
      %s445 = sphi 0, %s443
      %s446 = sphi 0, %s445
      %s460 = sphi 0, %s446
      %s464 = sphi 0, %s464
      %s466 = sphi 0, %s464
      %s467 = sphi 0, %s466
      %s481 = sphi 0, %s467
      %s485 = sphi 0, %s485
      %s487 = sphi 0, %s485
      %s488 = sphi 0, %s487
      %s502 = sphi 0, %s488
      %s506 = sphi 0, %s506
      %s508 = sphi 0, %s506
      %s509 = sphi 0, %s508
      %s523 = sphi 0, %s509
      %s527 = sphi 0, %s527
      %s529 = sphi 0, %s527
      %s530 = sphi 0, %s529
      %s544 = sphi 0, %s530
      %s548 = sphi 0, %s548
      %s550 = sphi 0, %s548
      %s551 = sphi 0, %s550
      %s565 = sphi 0, %s551
      %s571 = sphi 0, %s573
      %s574 = sphi 0, %s571
      %s575 = sphi 0, %s574
      %s591 = sphi 0, %s575
    $region4: #{policy_network_forward.1} parent=1 // loop_header_branch
      %34 = sbr.rel (%p32) target = $region8
    $region5: #{policy_network_forward.1} parent=1 // loop_body
      %s36 = ssub.s32 %s31, 1
      %s37 = ssub.s32 %s31, 2
      %s38 = sadd.s32 %s31, 1
      %s39 = ssub.s32 %s31, %s38
      %p40 = scmp.eq.s32.totalorder %s39, 0
      %s42 = sadd.s32 %s41, 1
      %s43 = scalar_select %p40, %s41, %s42
      %p46 = pneg %p40
      %p47 = scmp.eq.s32.totalorder %s31, 1
      %p48 = por %p46, %p47
      %p49 = scmp.ne.s32.totalorder %s41, %s44
      %p50 = scmp.eq.s32.totalorder %s31, 0
      %p51 = por %p49, %p50
      %p52 = scmp.ne.s32.totalorder %s41, %s44
      %p53 = scmp.eq.s32.totalorder %s36, 1
      %p54 = por %p52, %p53
      %p55 = scmp.ne.s32.totalorder %s44, %s45
      %p56 = scmp.eq.s32.totalorder %s36, 0
      %p57 = por %p55, %p56
      %p58 = scmp.ne.s32.totalorder %s44, %s45
      %p59 = scmp.eq.s32.totalorder %s37, 1
      %p60 = por %p58, %p59
      %p62 = scmp.ne.s32.totalorder %s45, %s61
      %p63 = scmp.eq.s32.totalorder %s37, 0
      %p64 = por %p62, %p63
      %s66 = sadd.s32 %s65, 1
      %p69 = scmp.eq.s32.totalorder %s31, 1
      %p70 = scmp.ne.s32.totalorder %s65, %s67
      %p71 = scmp.eq.s32.totalorder %s31, 0
      %p72 = por %p70, %p71
      %p73 = scmp.ne.s32.totalorder %s65, %s67
      %p74 = scmp.eq.s32.totalorder %s36, 1
      %p75 = por %p73, %p74
      %p76 = scmp.ne.s32.totalorder %s67, %s68
      %p77 = scmp.eq.s32.totalorder %s36, 0
      %p78 = por %p76, %p77
      %p79 = scmp.ne.s32.totalorder %s67, %s68
      %p80 = scmp.eq.s32.totalorder %s37, 1
      %p81 = por %p79, %p80
      %p83 = scmp.ne.s32.totalorder %s68, %s82
      %p84 = scmp.eq.s32.totalorder %s37, 0
      %p85 = por %p83, %p84
      %s87 = sadd.s32 %s86, 1
      %p90 = scmp.eq.s32.totalorder %s31, 1
      %p91 = scmp.ne.s32.totalorder %s86, %s88
      %p92 = scmp.eq.s32.totalorder %s31, 0
      %p93 = por %p91, %p92
      %p94 = scmp.ne.s32.totalorder %s86, %s88
      %p95 = scmp.eq.s32.totalorder %s36, 1
      %p96 = por %p94, %p95
      %p97 = scmp.ne.s32.totalorder %s88, %s89
      %p98 = scmp.eq.s32.totalorder %s36, 0
      %p99 = por %p97, %p98
      %p100 = scmp.ne.s32.totalorder %s88, %s89
      %p101 = scmp.eq.s32.totalorder %s37, 1
      %p102 = por %p100, %p101
      %p104 = scmp.ne.s32.totalorder %s89, %s103
      %p105 = scmp.eq.s32.totalorder %s37, 0
      %p106 = por %p104, %p105
      %s108 = sadd.s32 %s107, 1
      %p111 = scmp.eq.s32.totalorder %s31, 1
      %p112 = scmp.ne.s32.totalorder %s107, %s109
      %p113 = scmp.eq.s32.totalorder %s31, 0
      %p114 = por %p112, %p113
      %p115 = scmp.ne.s32.totalorder %s107, %s109
      %p116 = scmp.eq.s32.totalorder %s36, 1
      %p117 = por %p115, %p116
      %p118 = scmp.ne.s32.totalorder %s109, %s110
      %p119 = scmp.eq.s32.totalorder %s36, 0
      %p120 = por %p118, %p119
      %p121 = scmp.ne.s32.totalorder %s109, %s110
      %p122 = scmp.eq.s32.totalorder %s37, 1
      %p123 = por %p121, %p122
      %p125 = scmp.ne.s32.totalorder %s110, %s124
      %p126 = scmp.eq.s32.totalorder %s37, 0
      %p127 = por %p125, %p126
      %s129 = sadd.s32 %s128, 1
      %p132 = scmp.eq.s32.totalorder %s31, 1
      %p133 = scmp.ne.s32.totalorder %s128, %s130
      %p134 = scmp.eq.s32.totalorder %s31, 0
      %p135 = por %p133, %p134
      %p136 = scmp.ne.s32.totalorder %s128, %s130
      %p137 = scmp.eq.s32.totalorder %s36, 1
      %p138 = por %p136, %p137
      %p139 = scmp.ne.s32.totalorder %s130, %s131
      %p140 = scmp.eq.s32.totalorder %s36, 0
      %p141 = por %p139, %p140
      %p142 = scmp.ne.s32.totalorder %s130, %s131
      %p143 = scmp.eq.s32.totalorder %s37, 1
      %p144 = por %p142, %p143
      %p146 = scmp.ne.s32.totalorder %s131, %s145
      %p147 = scmp.eq.s32.totalorder %s37, 0
      %p148 = por %p146, %p147
      %s150 = sadd.s32 %s149, 1
      %p153 = scmp.eq.s32.totalorder %s31, 1
      %p154 = scmp.ne.s32.totalorder %s149, %s151
      %p155 = scmp.eq.s32.totalorder %s31, 0
      %p156 = por %p154, %p155
      %p157 = scmp.ne.s32.totalorder %s149, %s151
      %p158 = scmp.eq.s32.totalorder %s36, 1
      %p159 = por %p157, %p158
      %p160 = scmp.ne.s32.totalorder %s151, %s152
      %p161 = scmp.eq.s32.totalorder %s36, 0
      %p162 = por %p160, %p161
      %p163 = scmp.ne.s32.totalorder %s151, %s152
      %p164 = scmp.eq.s32.totalorder %s37, 1
      %p165 = por %p163, %p164
      %p167 = scmp.ne.s32.totalorder %s152, %s166
      %p168 = scmp.eq.s32.totalorder %s37, 0
      %p169 = por %p167, %p168
      %s171 = sadd.s32 %s170, 1
      %p174 = scmp.eq.s32.totalorder %s31, 1
      %p175 = scmp.ne.s32.totalorder %s170, %s172
      %p176 = scmp.eq.s32.totalorder %s31, 0
      %p177 = por %p175, %p176
      %p178 = scmp.ne.s32.totalorder %s170, %s172
      %p179 = scmp.eq.s32.totalorder %s36, 1
      %p180 = por %p178, %p179
      %p181 = scmp.ne.s32.totalorder %s172, %s173
      %p182 = scmp.eq.s32.totalorder %s36, 0
      %p183 = por %p181, %p182
      %p184 = scmp.ne.s32.totalorder %s172, %s173
      %p185 = scmp.eq.s32.totalorder %s37, 1
      %p186 = por %p184, %p185
      %p188 = scmp.ne.s32.totalorder %s173, %s187
      %p189 = scmp.eq.s32.totalorder %s37, 0
      %p190 = por %p188, %p189
      %s192 = sadd.s32 %s191, 1
      %p195 = scmp.eq.s32.totalorder %s31, 1
      %p196 = scmp.ne.s32.totalorder %s191, %s193
      %p197 = scmp.eq.s32.totalorder %s31, 0
      %p198 = por %p196, %p197
      %p199 = scmp.ne.s32.totalorder %s191, %s193
      %p200 = scmp.eq.s32.totalorder %s36, 1
      %p201 = por %p199, %p200
      %p202 = scmp.ne.s32.totalorder %s193, %s194
      %p203 = scmp.eq.s32.totalorder %s36, 0
      %p204 = por %p202, %p203
      %p205 = scmp.ne.s32.totalorder %s193, %s194
      %p206 = scmp.eq.s32.totalorder %s37, 1
      %p207 = por %p205, %p206
      %p209 = scmp.ne.s32.totalorder %s194, %s208
      %p210 = scmp.eq.s32.totalorder %s37, 0
      %p211 = por %p209, %p210
      %s213 = sadd.s32 %s212, 1
      %p216 = scmp.eq.s32.totalorder %s31, 1
      %p217 = scmp.ne.s32.totalorder %s212, %s214
      %p218 = scmp.eq.s32.totalorder %s31, 0
      %p219 = por %p217, %p218
      %p220 = scmp.ne.s32.totalorder %s212, %s214
      %p221 = scmp.eq.s32.totalorder %s36, 1
      %p222 = por %p220, %p221
      %p223 = scmp.ne.s32.totalorder %s214, %s215
      %p224 = scmp.eq.s32.totalorder %s36, 0
      %p225 = por %p223, %p224
      %p226 = scmp.ne.s32.totalorder %s214, %s215
      %p227 = scmp.eq.s32.totalorder %s37, 1
      %p228 = por %p226, %p227
      %p230 = scmp.ne.s32.totalorder %s215, %s229
      %p231 = scmp.eq.s32.totalorder %s37, 0
      %p232 = por %p230, %p231
      %s234 = sadd.s32 %s233, 1
      %p237 = scmp.eq.s32.totalorder %s31, 1
      %p238 = scmp.ne.s32.totalorder %s233, %s235
      %p239 = scmp.eq.s32.totalorder %s31, 0
      %p240 = por %p238, %p239
      %p241 = scmp.ne.s32.totalorder %s233, %s235
      %p242 = scmp.eq.s32.totalorder %s36, 1
      %p243 = por %p241, %p242
      %p244 = scmp.ne.s32.totalorder %s235, %s236
      %p245 = scmp.eq.s32.totalorder %s36, 0
      %p246 = por %p244, %p245
      %p247 = scmp.ne.s32.totalorder %s235, %s236
      %p248 = scmp.eq.s32.totalorder %s37, 1
      %p249 = por %p247, %p248
      %p251 = scmp.ne.s32.totalorder %s236, %s250
      %p252 = scmp.eq.s32.totalorder %s37, 0
      %p253 = por %p251, %p252
      %s255 = sadd.s32 %s254, 1
      %p258 = scmp.eq.s32.totalorder %s31, 1
      %p259 = scmp.ne.s32.totalorder %s254, %s256
      %p260 = scmp.eq.s32.totalorder %s31, 0
      %p261 = por %p259, %p260
      %p262 = scmp.ne.s32.totalorder %s254, %s256
      %p263 = scmp.eq.s32.totalorder %s36, 1
      %p264 = por %p262, %p263
      %p265 = scmp.ne.s32.totalorder %s256, %s257
      %p266 = scmp.eq.s32.totalorder %s36, 0
      %p267 = por %p265, %p266
      %p268 = scmp.ne.s32.totalorder %s256, %s257
      %p269 = scmp.eq.s32.totalorder %s37, 1
      %p270 = por %p268, %p269
      %p272 = scmp.ne.s32.totalorder %s257, %s271
      %p273 = scmp.eq.s32.totalorder %s37, 0
      %p274 = por %p272, %p273
      %s276 = sadd.s32 %s275, 1
      %p279 = scmp.eq.s32.totalorder %s31, 1
      %p280 = scmp.ne.s32.totalorder %s275, %s277
      %p281 = scmp.eq.s32.totalorder %s31, 0
      %p282 = por %p280, %p281
      %p283 = scmp.ne.s32.totalorder %s275, %s277
      %p284 = scmp.eq.s32.totalorder %s36, 1
      %p285 = por %p283, %p284
      %p286 = scmp.ne.s32.totalorder %s277, %s278
      %p287 = scmp.eq.s32.totalorder %s36, 0
      %p288 = por %p286, %p287
      %p289 = scmp.ne.s32.totalorder %s277, %s278
      %p290 = scmp.eq.s32.totalorder %s37, 1
      %p291 = por %p289, %p290
      %p293 = scmp.ne.s32.totalorder %s278, %s292
      %p294 = scmp.eq.s32.totalorder %s37, 0
      %p295 = por %p293, %p294
      %s297 = sadd.s32 %s296, 1
      %p300 = scmp.eq.s32.totalorder %s31, 1
      %p301 = scmp.ne.s32.totalorder %s296, %s298
      %p302 = scmp.eq.s32.totalorder %s31, 0
      %p303 = por %p301, %p302
      %p304 = scmp.ne.s32.totalorder %s296, %s298
      %p305 = scmp.eq.s32.totalorder %s36, 1
      %p306 = por %p304, %p305
      %p307 = scmp.ne.s32.totalorder %s298, %s299
      %p308 = scmp.eq.s32.totalorder %s36, 0
      %p309 = por %p307, %p308
      %p310 = scmp.ne.s32.totalorder %s298, %s299
      %p311 = scmp.eq.s32.totalorder %s37, 1
      %p312 = por %p310, %p311
      %p314 = scmp.ne.s32.totalorder %s299, %s313
      %p315 = scmp.eq.s32.totalorder %s37, 0
      %p316 = por %p314, %p315
      %s318 = sadd.s32 %s317, 1
      %p321 = scmp.eq.s32.totalorder %s31, 1
      %p322 = scmp.ne.s32.totalorder %s317, %s319
      %p323 = scmp.eq.s32.totalorder %s31, 0
      %p324 = por %p322, %p323
      %p325 = scmp.ne.s32.totalorder %s317, %s319
      %p326 = scmp.eq.s32.totalorder %s36, 1
      %p327 = por %p325, %p326
      %p328 = scmp.ne.s32.totalorder %s319, %s320
      %p329 = scmp.eq.s32.totalorder %s36, 0
      %p330 = por %p328, %p329
      %p331 = scmp.ne.s32.totalorder %s319, %s320
      %p332 = scmp.eq.s32.totalorder %s37, 1
      %p333 = por %p331, %p332
      %p335 = scmp.ne.s32.totalorder %s320, %s334
      %p336 = scmp.eq.s32.totalorder %s37, 0
      %p337 = por %p335, %p336
      %s339 = sadd.s32 %s338, 1
      %p342 = scmp.eq.s32.totalorder %s31, 1
      %p343 = scmp.ne.s32.totalorder %s338, %s340
      %p344 = scmp.eq.s32.totalorder %s31, 0
      %p345 = por %p343, %p344
      %p346 = scmp.ne.s32.totalorder %s338, %s340
      %p347 = scmp.eq.s32.totalorder %s36, 1
      %p348 = por %p346, %p347
      %p349 = scmp.ne.s32.totalorder %s340, %s341
      %p350 = scmp.eq.s32.totalorder %s36, 0
      %p351 = por %p349, %p350
      %p352 = scmp.ne.s32.totalorder %s340, %s341
      %p353 = scmp.eq.s32.totalorder %s37, 1
      %p354 = por %p352, %p353
      %p356 = scmp.ne.s32.totalorder %s341, %s355
      %p357 = scmp.eq.s32.totalorder %s37, 0
      %p358 = por %p356, %p357
      %s360 = sadd.s32 %s359, 1
      %p363 = scmp.eq.s32.totalorder %s31, 1
      %p364 = scmp.ne.s32.totalorder %s359, %s361
      %p365 = scmp.eq.s32.totalorder %s31, 0
      %p366 = por %p364, %p365
      %p367 = scmp.ne.s32.totalorder %s359, %s361
      %p368 = scmp.eq.s32.totalorder %s36, 1
      %p369 = por %p367, %p368
      %p370 = scmp.ne.s32.totalorder %s361, %s362
      %p371 = scmp.eq.s32.totalorder %s36, 0
      %p372 = por %p370, %p371
      %p373 = scmp.ne.s32.totalorder %s361, %s362
      %p374 = scmp.eq.s32.totalorder %s37, 1
      %p375 = por %p373, %p374
      %p377 = scmp.ne.s32.totalorder %s362, %s376
      %p378 = scmp.eq.s32.totalorder %s37, 0
      %p379 = por %p377, %p378
      %s381 = sadd.s32 %s380, 1
      %p384 = scmp.eq.s32.totalorder %s31, 1
      %p385 = scmp.ne.s32.totalorder %s380, %s382
      %p386 = scmp.eq.s32.totalorder %s31, 0
      %p387 = por %p385, %p386
      %p388 = scmp.ne.s32.totalorder %s380, %s382
      %p389 = scmp.eq.s32.totalorder %s36, 1
      %p390 = por %p388, %p389
      %p391 = scmp.ne.s32.totalorder %s382, %s383
      %p392 = scmp.eq.s32.totalorder %s36, 0
      %p393 = por %p391, %p392
      %p394 = scmp.ne.s32.totalorder %s382, %s383
      %p395 = scmp.eq.s32.totalorder %s37, 1
      %p396 = por %p394, %p395
      %p398 = scmp.ne.s32.totalorder %s383, %s397
      %p399 = scmp.eq.s32.totalorder %s37, 0
      %p400 = por %p398, %p399
      %s402 = sadd.s32 %s401, 1
      %p405 = scmp.eq.s32.totalorder %s31, 1
      %p406 = scmp.ne.s32.totalorder %s401, %s403
      %p407 = scmp.eq.s32.totalorder %s31, 0
      %p408 = por %p406, %p407
      %p409 = scmp.ne.s32.totalorder %s401, %s403
      %p410 = scmp.eq.s32.totalorder %s36, 1
      %p411 = por %p409, %p410
      %p412 = scmp.ne.s32.totalorder %s403, %s404
      %p413 = scmp.eq.s32.totalorder %s36, 0
      %p414 = por %p412, %p413
      %p415 = scmp.ne.s32.totalorder %s403, %s404
      %p416 = scmp.eq.s32.totalorder %s37, 1
      %p417 = por %p415, %p416
      %p419 = scmp.ne.s32.totalorder %s404, %s418
      %p420 = scmp.eq.s32.totalorder %s37, 0
      %p421 = por %p419, %p420
      %s423 = sadd.s32 %s422, 1
      %p426 = scmp.eq.s32.totalorder %s31, 1
      %p427 = scmp.ne.s32.totalorder %s422, %s424
      %p428 = scmp.eq.s32.totalorder %s31, 0
      %p429 = por %p427, %p428
      %p430 = scmp.ne.s32.totalorder %s422, %s424
      %p431 = scmp.eq.s32.totalorder %s36, 1
      %p432 = por %p430, %p431
      %p433 = scmp.ne.s32.totalorder %s424, %s425
      %p434 = scmp.eq.s32.totalorder %s36, 0
      %p435 = por %p433, %p434
      %p436 = scmp.ne.s32.totalorder %s424, %s425
      %p437 = scmp.eq.s32.totalorder %s37, 1
      %p438 = por %p436, %p437
      %p440 = scmp.ne.s32.totalorder %s425, %s439
      %p441 = scmp.eq.s32.totalorder %s37, 0
      %p442 = por %p440, %p441
      %s444 = sadd.s32 %s443, 1
      %p447 = scmp.eq.s32.totalorder %s31, 1
      %p448 = scmp.ne.s32.totalorder %s443, %s445
      %p449 = scmp.eq.s32.totalorder %s31, 0
      %p450 = por %p448, %p449
      %p451 = scmp.ne.s32.totalorder %s443, %s445
      %p452 = scmp.eq.s32.totalorder %s36, 1
      %p453 = por %p451, %p452
      %p454 = scmp.ne.s32.totalorder %s445, %s446
      %p455 = scmp.eq.s32.totalorder %s36, 0
      %p456 = por %p454, %p455
      %p457 = scmp.ne.s32.totalorder %s445, %s446
      %p458 = scmp.eq.s32.totalorder %s37, 1
      %p459 = por %p457, %p458
      %p461 = scmp.ne.s32.totalorder %s446, %s460
      %p462 = scmp.eq.s32.totalorder %s37, 0
      %p463 = por %p461, %p462
      %s465 = sadd.s32 %s464, 1
      %p468 = scmp.eq.s32.totalorder %s31, 1
      %p469 = scmp.ne.s32.totalorder %s464, %s466
      %p470 = scmp.eq.s32.totalorder %s31, 0
      %p471 = por %p469, %p470
      %p472 = scmp.ne.s32.totalorder %s464, %s466
      %p473 = scmp.eq.s32.totalorder %s36, 1
      %p474 = por %p472, %p473
      %p475 = scmp.ne.s32.totalorder %s466, %s467
      %p476 = scmp.eq.s32.totalorder %s36, 0
      %p477 = por %p475, %p476
      %p478 = scmp.ne.s32.totalorder %s466, %s467
      %p479 = scmp.eq.s32.totalorder %s37, 1
      %p480 = por %p478, %p479
      %p482 = scmp.ne.s32.totalorder %s467, %s481
      %p483 = scmp.eq.s32.totalorder %s37, 0
      %p484 = por %p482, %p483
      %s486 = sadd.s32 %s485, 1
      %p489 = scmp.eq.s32.totalorder %s31, 1
      %p490 = scmp.ne.s32.totalorder %s485, %s487
      %p491 = scmp.eq.s32.totalorder %s31, 0
      %p492 = por %p490, %p491
      %p493 = scmp.ne.s32.totalorder %s485, %s487
      %p494 = scmp.eq.s32.totalorder %s36, 1
      %p495 = por %p493, %p494
      %p496 = scmp.ne.s32.totalorder %s487, %s488
      %p497 = scmp.eq.s32.totalorder %s36, 0
      %p498 = por %p496, %p497
      %p499 = scmp.ne.s32.totalorder %s487, %s488
      %p500 = scmp.eq.s32.totalorder %s37, 1
      %p501 = por %p499, %p500
      %p503 = scmp.ne.s32.totalorder %s488, %s502
      %p504 = scmp.eq.s32.totalorder %s37, 0
      %p505 = por %p503, %p504
      %s507 = sadd.s32 %s506, 1
      %p510 = scmp.eq.s32.totalorder %s31, 1
      %p511 = scmp.ne.s32.totalorder %s506, %s508
      %p512 = scmp.eq.s32.totalorder %s31, 0
      %p513 = por %p511, %p512
      %p514 = scmp.ne.s32.totalorder %s506, %s508
      %p515 = scmp.eq.s32.totalorder %s36, 1
      %p516 = por %p514, %p515
      %p517 = scmp.ne.s32.totalorder %s508, %s509
      %p518 = scmp.eq.s32.totalorder %s36, 0
      %p519 = por %p517, %p518
      %p520 = scmp.ne.s32.totalorder %s508, %s509
      %p521 = scmp.eq.s32.totalorder %s37, 1
      %p522 = por %p520, %p521
      %p524 = scmp.ne.s32.totalorder %s509, %s523
      %p525 = scmp.eq.s32.totalorder %s37, 0
      %p526 = por %p524, %p525
      %s528 = sadd.s32 %s527, 1
      %p531 = scmp.eq.s32.totalorder %s31, 1
      %p532 = scmp.ne.s32.totalorder %s527, %s529
      %p533 = scmp.eq.s32.totalorder %s31, 0
      %p534 = por %p532, %p533
      %p535 = scmp.ne.s32.totalorder %s527, %s529
      %p536 = scmp.eq.s32.totalorder %s36, 1
      %p537 = por %p535, %p536
      %p538 = scmp.ne.s32.totalorder %s529, %s530
      %p539 = scmp.eq.s32.totalorder %s36, 0
      %p540 = por %p538, %p539
      %p541 = scmp.ne.s32.totalorder %s529, %s530
      %p542 = scmp.eq.s32.totalorder %s37, 1
      %p543 = por %p541, %p542
      %p545 = scmp.ne.s32.totalorder %s530, %s544
      %p546 = scmp.eq.s32.totalorder %s37, 0
      %p547 = por %p545, %p546
      %s549 = sadd.s32 %s548, 1
      %p552 = scmp.eq.s32.totalorder %s31, 1
      %p553 = scmp.ne.s32.totalorder %s548, %s550
      %p554 = scmp.eq.s32.totalorder %s31, 0
      %p555 = por %p553, %p554
      %p556 = scmp.ne.s32.totalorder %s548, %s550
      %p557 = scmp.eq.s32.totalorder %s36, 1
      %p558 = por %p556, %p557
      %p559 = scmp.ne.s32.totalorder %s550, %s551
      %p560 = scmp.eq.s32.totalorder %s36, 0
      %p561 = por %p559, %p560
      %p562 = scmp.ne.s32.totalorder %s550, %s551
      %p563 = scmp.eq.s32.totalorder %s37, 1
      %p564 = por %p562, %p563
      %p566 = scmp.ne.s32.totalorder %s551, %s565
      %p567 = scmp.eq.s32.totalorder %s37, 0
      %p568 = por %p566, %p567
      %s569 = ssub.s32 %s31, %s38
      %p570 = scmp.eq.s32.totalorder %s569, 0
      %s572 = sadd.s32 %s571, 1
      %s573 = scalar_select %p570, %s571, %s572
      %p576 = pneg %p570
      %p577 = scmp.eq.s32.totalorder %s31, 1
      %p578 = por %p576, %p577
      %p579 = scmp.ne.s32.totalorder %s571, %s574
      %p580 = scmp.eq.s32.totalorder %s31, 0
      %p581 = por %p579, %p580
      %p582 = scmp.ne.s32.totalorder %s571, %s574
      %p583 = scmp.eq.s32.totalorder %s36, 1
      %p584 = por %p582, %p583
      %p585 = scmp.ne.s32.totalorder %s574, %s575
      %p586 = scmp.eq.s32.totalorder %s36, 0
      %p587 = por %p585, %p586
      %p588 = scmp.ne.s32.totalorder %s574, %s575
      %p589 = scmp.eq.s32.totalorder %s37, 1
      %p590 = por %p588, %p589
      %p592 = scmp.ne.s32.totalorder %s575, %s591
      %p593 = scmp.eq.s32.totalorder %s37, 0
      %p594 = por %p592, %p593
      %p595 = scmp.le.s32.totalorder 1, %s31
      %p596 = scmp.lt.s32.totalorder %s31, 3
      %p597 = pnand %p595, %p596
      %p598 = pneg %p597
      // Predicated region
      $region9: #{policy_network_forward.1} parent=5 // pred_check
        _
      $region10: #{policy_network_forward.1} parent=5 // pred_check_branch
        %600 = sbr.rel (%p597) target = $region12
      $region11: #{policy_network_forward.1} parent=5 // pred_region
        %s601 = ssub.s32 %s31, 1
        // Predicated region
        $region13: #{policy_network_forward.1} parent=11 // pred_check
          %p602 = pneg %p78
        $region14: #{policy_network_forward.1} parent=11 // pred_check_branch
          %604 = sbr.rel (%p602) target = $region16
        $region15: #{policy_network_forward.1} parent=11 // pred_region
          _
        $region16: #{policy_network_forward.1} parent=11 // pred_fallthru
          _
        // Predicated region
        $region17: #{policy_network_forward.1} parent=11 // pred_check
          %p605 = pneg %p99
        $region18: #{policy_network_forward.1} parent=11 // pred_check_branch
          %607 = sbr.rel (%p605) target = $region20
        $region19: #{policy_network_forward.1} parent=11 // pred_region
          _
        $region20: #{policy_network_forward.1} parent=11 // pred_fallthru
          _
        // Predicated region
        $region21: #{policy_network_forward.1} parent=11 // pred_check
          %p608 = pneg %p120
        $region22: #{policy_network_forward.1} parent=11 // pred_check_branch
          %610 = sbr.rel (%p608) target = $region24
        $region23: #{policy_network_forward.1} parent=11 // pred_region
          _
        $region24: #{policy_network_forward.1} parent=11 // pred_fallthru
          _
        // Predicated region
        $region25: #{policy_network_forward.1} parent=11 // pred_check
          %p611 = pneg %p141
        $region26: #{policy_network_forward.1} parent=11 // pred_check_branch
          %613 = sbr.rel (%p611) target = $region28
        $region27: #{policy_network_forward.1} parent=11 // pred_region
          _
        $region28: #{policy_network_forward.1} parent=11 // pred_fallthru
          _
        // Predicated region
        $region29: #{policy_network_forward.1} parent=11 // pred_check
          %p614 = pneg %p162
        $region30: #{policy_network_forward.1} parent=11 // pred_check_branch
          %616 = sbr.rel (%p614) target = $region32
        $region31: #{policy_network_forward.1} parent=11 // pred_region
          _
        $region32: #{policy_network_forward.1} parent=11 // pred_fallthru
          _
        // Predicated region
        $region33: #{policy_network_forward.1} parent=11 // pred_check
          %p617 = pneg %p183
        $region34: #{policy_network_forward.1} parent=11 // pred_check_branch
          %619 = sbr.rel (%p617) target = $region36
        $region35: #{policy_network_forward.1} parent=11 // pred_region
          _
        $region36: #{policy_network_forward.1} parent=11 // pred_fallthru
          _
        // Predicated region
        $region37: #{policy_network_forward.1} parent=11 // pred_check
          %p620 = pneg %p204
        $region38: #{policy_network_forward.1} parent=11 // pred_check_branch
          %622 = sbr.rel (%p620) target = $region40
        $region39: #{policy_network_forward.1} parent=11 // pred_region
          _
        $region40: #{policy_network_forward.1} parent=11 // pred_fallthru
          _
        // Predicated region
        $region41: #{policy_network_forward.1} parent=11 // pred_check
          %p623 = pneg %p225
        $region42: #{policy_network_forward.1} parent=11 // pred_check_branch
          %625 = sbr.rel (%p623) target = $region44
        $region43: #{policy_network_forward.1} parent=11 // pred_region
          _
        $region44: #{policy_network_forward.1} parent=11 // pred_fallthru
          _
        // Predicated region
        $region45: #{policy_network_forward.1} parent=11 // pred_check
          %p626 = pneg %p246
        $region46: #{policy_network_forward.1} parent=11 // pred_check_branch
          %628 = sbr.rel (%p626) target = $region48
        $region47: #{policy_network_forward.1} parent=11 // pred_region
          _
        $region48: #{policy_network_forward.1} parent=11 // pred_fallthru
          _
        // Predicated region
        $region49: #{policy_network_forward.1} parent=11 // pred_check
          %p629 = pneg %p267
        $region50: #{policy_network_forward.1} parent=11 // pred_check_branch
          %631 = sbr.rel (%p629) target = $region52
        $region51: #{policy_network_forward.1} parent=11 // pred_region
          _
        $region52: #{policy_network_forward.1} parent=11 // pred_fallthru
          _
        // Predicated region
        $region53: #{policy_network_forward.1} parent=11 // pred_check
          %p632 = pneg %p288
        $region54: #{policy_network_forward.1} parent=11 // pred_check_branch
          %634 = sbr.rel (%p632) target = $region56
        $region55: #{policy_network_forward.1} parent=11 // pred_region
          _
        $region56: #{policy_network_forward.1} parent=11 // pred_fallthru
          _
        // Predicated region
        $region57: #{policy_network_forward.1} parent=11 // pred_check
          %p635 = pneg %p309
        $region58: #{policy_network_forward.1} parent=11 // pred_check_branch
          %637 = sbr.rel (%p635) target = $region60
        $region59: #{policy_network_forward.1} parent=11 // pred_region
          _
        $region60: #{policy_network_forward.1} parent=11 // pred_fallthru
          _
        // Predicated region
        $region61: #{policy_network_forward.1} parent=11 // pred_check
          %p638 = pneg %p330
        $region62: #{policy_network_forward.1} parent=11 // pred_check_branch
          %640 = sbr.rel (%p638) target = $region64
        $region63: #{policy_network_forward.1} parent=11 // pred_region
          _
        $region64: #{policy_network_forward.1} parent=11 // pred_fallthru
          _
        // Predicated region
        $region65: #{policy_network_forward.1} parent=11 // pred_check
          %p641 = pneg %p351
        $region66: #{policy_network_forward.1} parent=11 // pred_check_branch
          %643 = sbr.rel (%p641) target = $region68
        $region67: #{policy_network_forward.1} parent=11 // pred_region
          _
        $region68: #{policy_network_forward.1} parent=11 // pred_fallthru
          _
        // Predicated region
        $region69: #{policy_network_forward.1} parent=11 // pred_check
          %p644 = pneg %p372
        $region70: #{policy_network_forward.1} parent=11 // pred_check_branch
          %646 = sbr.rel (%p644) target = $region72
        $region71: #{policy_network_forward.1} parent=11 // pred_region
          _
        $region72: #{policy_network_forward.1} parent=11 // pred_fallthru
          _
        // Predicated region
        $region73: #{policy_network_forward.1} parent=11 // pred_check
          %p647 = pneg %p393
        $region74: #{policy_network_forward.1} parent=11 // pred_check_branch
          %649 = sbr.rel (%p647) target = $region76
        $region75: #{policy_network_forward.1} parent=11 // pred_region
          _
        $region76: #{policy_network_forward.1} parent=11 // pred_fallthru
          _
        // Predicated region
        $region77: #{policy_network_forward.1} parent=11 // pred_check
          %p650 = pneg %p414
        $region78: #{policy_network_forward.1} parent=11 // pred_check_branch
          %652 = sbr.rel (%p650) target = $region80
        $region79: #{policy_network_forward.1} parent=11 // pred_region
          _
        $region80: #{policy_network_forward.1} parent=11 // pred_fallthru
          _
        // Predicated region
        $region81: #{policy_network_forward.1} parent=11 // pred_check
          %p653 = pneg %p435
        $region82: #{policy_network_forward.1} parent=11 // pred_check_branch
          %655 = sbr.rel (%p653) target = $region84
        $region83: #{policy_network_forward.1} parent=11 // pred_region
          _
        $region84: #{policy_network_forward.1} parent=11 // pred_fallthru
          _
        // Predicated region
        $region85: #{policy_network_forward.1} parent=11 // pred_check
          %p656 = pneg %p456
        $region86: #{policy_network_forward.1} parent=11 // pred_check_branch
          %658 = sbr.rel (%p656) target = $region88
        $region87: #{policy_network_forward.1} parent=11 // pred_region
          _
        $region88: #{policy_network_forward.1} parent=11 // pred_fallthru
          _
        // Predicated region
        $region89: #{policy_network_forward.1} parent=11 // pred_check
          %p659 = pneg %p477
        $region90: #{policy_network_forward.1} parent=11 // pred_check_branch
          %661 = sbr.rel (%p659) target = $region92
        $region91: #{policy_network_forward.1} parent=11 // pred_region
          _
        $region92: #{policy_network_forward.1} parent=11 // pred_fallthru
          _
        // Predicated region
        $region93: #{policy_network_forward.1} parent=11 // pred_check
          %p662 = pneg %p498
        $region94: #{policy_network_forward.1} parent=11 // pred_check_branch
          %664 = sbr.rel (%p662) target = $region96
        $region95: #{policy_network_forward.1} parent=11 // pred_region
          _
        $region96: #{policy_network_forward.1} parent=11 // pred_fallthru
          _
        // Predicated region
        $region97: #{policy_network_forward.1} parent=11 // pred_check
          %p665 = pneg %p519
        $region98: #{policy_network_forward.1} parent=11 // pred_check_branch
          %667 = sbr.rel (%p665) target = $region100
        $region99: #{policy_network_forward.1} parent=11 // pred_region
          _
        $region100: #{policy_network_forward.1} parent=11 // pred_fallthru
          _
        // Predicated region
        $region101: #{policy_network_forward.1} parent=11 // pred_check
          %p668 = pneg %p540
        $region102: #{policy_network_forward.1} parent=11 // pred_check_branch
          %670 = sbr.rel (%p668) target = $region104
        $region103: #{policy_network_forward.1} parent=11 // pred_region
          _
        $region104: #{policy_network_forward.1} parent=11 // pred_fallthru
          _
        // Predicated region
        $region105: #{policy_network_forward.1} parent=11 // pred_check
          %p671 = pneg %p561
        $region106: #{policy_network_forward.1} parent=11 // pred_check_branch
          %673 = sbr.rel (%p671) target = $region108
        $region107: #{policy_network_forward.1} parent=11 // pred_region
          _
        $region108: #{policy_network_forward.1} parent=11 // pred_fallthru
          _
      $region12: #{policy_network_forward.1} parent=5 // pred_fallthru
        _
      %p674 = scmp.lt.s32.totalorder %s31, 2
      // Predicated region
      $region109: #{policy_network_forward.1} parent=5 // pred_check
        %p675 = pneg %p674
      $region110: #{policy_network_forward.1} parent=5 // pred_check_branch
        %677 = sbr.rel (%p675) target = $region112
      $region111: #{policy_network_forward.1} parent=5 // pred_region
        // Predicated region
        $region113: #{policy_network_forward.1} parent=111 // pred_check
          %p678 = pneg %p51
        $region114: #{policy_network_forward.1} parent=111 // pred_check_branch
          %680 = sbr.rel (%p678) target = $region116
        $region115: #{policy_network_forward.1} parent=111 // pred_region
          %s681 = sand.u32 %s41, 1
          %s682 = sand.u32 %s41, 1
          %s683 = smul.addr %s682, 16
          %s684 = scalar_lea.vmem [#allocation2], %s683
          %s685 = smul.addr %s31, 8
          %s686 = scalar_lea.vmem %s0, %s685
          // Predicated region
          $region117: #{policy_network_forward.1} parent=115 // pred_check
            _
          $region118: #{policy_network_forward.1} parent=115 // pred_check_branch
            %688 = sbr.rel (0) target = $region120
          $region119: #{policy_network_forward.1} parent=115 // pred_region
            // Predicated region
            $region121: #{policy_network_forward.1} parent=119 // pred_check
              _
            $region122: #{policy_network_forward.1} parent=119 // pred_check_branch
              %690 = sbr.rel (0) target = $region124
            $region123: #{policy_network_forward.1} parent=119 // pred_region
              // Predicated region
              $region136: #{policy_network_forward.1} parent=123 // pred_check
                _
              $region137: #{policy_network_forward.1} parent=123 // pred_check_branch
                %708 = sbr.rel (0) target = $region139
              $region138: #{policy_network_forward.1} parent=123 // pred_region
                loop: start=0, step=1, limit=1
                $region140: #{policy_network_forward.1} parent=138 // loop_pre_header
                  _
                $region141: #{policy_network_forward.1} parent=138 // loop_header
                  %s710 = sphi 0, %s714
                  %p711 = scmp.ge.s32.totalorder %s710, 1
                  %s715 = sphi %s686, %s686
                  %s716 = sphi %s684, %s684
                $region142: #{policy_network_forward.1} parent=138 // loop_header_branch
                  %713 = sbr.rel (%p711) target = $region146
                $region143: #{policy_network_forward.1} parent=138 // loop_body
                  %v717 = vld [vmem:[%s715] sm:$0xff]
                  %718 = vst [vmem:[%s716] sm:$0xff] %v717
                  %v719 = vld [vmem:[%s715 + $0x10] sm:$0xff]
                  %720 = vst [vmem:[%s716 + $0x8] sm:$0xff] %v719
                $region144: #{policy_network_forward.1} parent=138 // loop_footer
                  %s714 = sadd.s32 1, %s710
                $region145: #{policy_network_forward.1} parent=138 // loop_footer_branch
                  %709 = sbr.rel target = $region141
                $region146: #{policy_network_forward.1} parent=138 // loop_exit
                  _
              $region139: #{policy_network_forward.1} parent=123 // pred_fallthru
                _
              // Predicated region
              $region147: #{policy_network_forward.1} parent=123 // pred_check
                _
              $region148: #{policy_network_forward.1} parent=123 // pred_check_branch
                %722 = sbr.rel target = $region150
              $region149: #{policy_network_forward.1} parent=123 // pred_region
                _
              $region150: #{policy_network_forward.1} parent=123 // pred_fallthru
                _
            $region124: #{policy_network_forward.1} parent=119 // pred_fallthru
              _
            // Predicated region
            $region125: #{policy_network_forward.1} parent=119 // pred_check
              _
            $region126: #{policy_network_forward.1} parent=119 // pred_check_branch
              %692 = sbr.rel target = $region128
            $region127: #{policy_network_forward.1} parent=119 // pred_region
              %s694 = ssub.s32 256, 1
              loop: start=0, step=1, limit=1
              $region129: #{policy_network_forward.1} parent=127 // loop_pre_header
                _
              $region130: #{policy_network_forward.1} parent=127 // loop_header
                %s696 = sphi 0, %s700
                %p697 = scmp.ge.s32.totalorder %s696, 1
                %s701 = sphi %s686, %s686
                %s702 = sphi %s684, %s684
              $region131: #{policy_network_forward.1} parent=127 // loop_header_branch
                %699 = sbr.rel (%p697) target = $region135
              $region132: #{policy_network_forward.1} parent=127 // loop_body
                %v703 = vld [vmem:[%s701] sm:%s694]
                %704 = vst [vmem:[%s702] sm:%s694] %v703
                %v705 = vld [vmem:[%s701 + $0x10] sm:%s694]
                %706 = vst [vmem:[%s702 + $0x8] sm:%s694] %v705
              $region133: #{policy_network_forward.1} parent=127 // loop_footer
                %s700 = sadd.s32 1, %s696
              $region134: #{policy_network_forward.1} parent=127 // loop_footer_branch
                %695 = sbr.rel target = $region130
              $region135: #{policy_network_forward.1} parent=127 // loop_exit
                _
            $region128: #{policy_network_forward.1} parent=119 // pred_fallthru
              _
          $region120: #{policy_network_forward.1} parent=115 // pred_fallthru
            _
          %723 = vnop
        $region116: #{policy_network_forward.1} parent=111 // pred_fallthru
          _
      $region112: #{policy_network_forward.1} parent=5 // pred_fallthru
        _
      %p724 = scmp.le.s32.totalorder 1, %s31
      %p725 = scmp.lt.s32.totalorder %s31, 3
      %p726 = pnand %p724, %p725
      %p727 = pneg %p726
      // Predicated region
      $region151: #{policy_network_forward.1} parent=5 // pred_check
        _
      $region152: #{policy_network_forward.1} parent=5 // pred_check_branch
        %729 = sbr.rel (%p726) target = $region154
      $region153: #{policy_network_forward.1} parent=5 // pred_region
        %s730 = ssub.s32 %s31, 1
        %s731 = sand.u32 %s44, 1
        %s732 = sand.u32 %s44, 1
        %s733 = smul.addr %s732, 16
        %s734 = scalar_lea.vmem [#allocation2], %s733
        // Predicated region
        $region155: #{policy_network_forward.1} parent=153 // pred_check
          %p735 = pneg %p57
        $region156: #{policy_network_forward.1} parent=153 // pred_check_branch
          %737 = sbr.rel (%p735) target = $region158
        $region157: #{policy_network_forward.1} parent=153 // pred_region
          _
        $region158: #{policy_network_forward.1} parent=153 // pred_fallthru
          _
        %s738 = sand.u32 %s44, 1
        %s739 = sand.u32 %s44, 1
        %s740 = smul.addr %s739, 16
        %s741 = scalar_lea.vmem [#allocation2], %s740
        %p742 = pneg %p57
        %p743 = pneg %p54
        %p744 = pneg %p78
        %p745 = pneg %p75
        %p746 = pneg %p99
        %p747 = pneg %p96
        %p748 = pneg %p120
        %p749 = pneg %p117
        %p750 = pneg %p141
        %p751 = pneg %p138
        %p752 = pneg %p162
        %p753 = pneg %p159
        %p754 = pneg %p183
        %p755 = pneg %p180
        %p756 = pneg %p204
        %p757 = pneg %p201
        %p758 = pneg %p225
        %p759 = pneg %p222
        %p760 = pneg %p246
        %p761 = pneg %p243
        %p762 = pneg %p267
        %p763 = pneg %p264
        %p764 = pneg %p288
        %p765 = pneg %p285
        %p766 = pneg %p309
        %p767 = pneg %p306
        %p768 = pneg %p330
        %p769 = pneg %p327
        %p770 = pneg %p351
        %p771 = pneg %p348
        %p772 = pneg %p372
        %p773 = pneg %p369
        %p774 = pneg %p393
        %p775 = pneg %p390
        %p776 = pneg %p414
        %p777 = pneg %p411
        %p778 = pneg %p435
        %p779 = pneg %p432
        %p780 = pneg %p456
        %p781 = pneg %p453
        %p782 = pneg %p477
        %p783 = pneg %p474
        %p784 = pneg %p498
        %p785 = pneg %p495
        %p786 = pneg %p519
        %p787 = pneg %p516
        %p788 = pneg %p540
        %p789 = pneg %p537
        %p790 = pneg %p561
        %p791 = pneg %p558
        %p792 = pneg %p587
        %p793 = pneg %p584
        %p794 = scmp.lt.s32.totalorder %s36, 1
        %s795 = scalar_select %p794, %s36, 1
        %s796 = smul.addr %s795, 8
        %s797 = scalar_lea.vmem %s25, %s796
        %p798 = scmp.lt.s32.totalorder %s36, 1
        %s799 = scalar_select %p798, %s36, 1
        %s800 = smul.addr %s799, 8
        %s801 = scalar_lea.vmem %s25, %s800
        %v802 = vld [vmem:[%s734] sm:$0xff]
        %v803 = vld [vmem:[%s734 + $0x8] sm:$0xff]
        %v804 = vld [vmem:[%s1] sm:$0xff]
        %v805 = vld [vmem:[%s1 + $0x8] sm:$0xff]
        %v806 = vld [vmem:[%s1 + $0x10] sm:$0xff]
        %v807 = vld [vmem:[%s1 + $0x18] sm:$0xff]
        %v808 = vld [vmem:[%s1 + $0x20] sm:$0xff]
        %v809 = vld [vmem:[%s1 + $0x28] sm:$0xff]
        %v810 = vld [vmem:[%s1 + $0x30] sm:$0xff]
        %v811 = vld [vmem:[%s1 + $0x38] sm:$0xff]
        %v812 = vld [vmem:[%s1 + $0x40] sm:$0xff]
        %v813 = vld [vmem:[%s1 + $0x48] sm:$0xff]
        %v814 = vld [vmem:[%s1 + $0x50] sm:$0xff]
        %v815 = vld [vmem:[%s1 + $0x58] sm:$0xff]
        %v816 = vld [vmem:[%s1 + $0x60] sm:$0xff]
        %v817 = vld [vmem:[%s1 + $0x68] sm:$0xff]
        %v818 = vld [vmem:[%s1 + $0x70] sm:$0xff]
        %v819 = vld [vmem:[%s1 + $0x78] sm:$0xff]
        %v820 = vld [vmem:[%s2] sm:$0xff]
        %v821 = vld [vmem:[%s2 + $0x8] sm:$0xff]
        %v822 = vld [vmem:[%s2 + $0x10] sm:$0xff]
        %v823 = vld [vmem:[%s2 + $0x18] sm:$0xff]
        %v824 = vld [vmem:[%s2 + $0x20] sm:$0xff]
        %v825 = vld [vmem:[%s2 + $0x28] sm:$0xff]
        %v826 = vld [vmem:[%s2 + $0x30] sm:$0xff]
        %v827 = vld [vmem:[%s2 + $0x38] sm:$0xff]
        %v828 = vld [vmem:[%s2 + $0x40] sm:$0xff]
        %v829 = vld [vmem:[%s2 + $0x48] sm:$0xff]
        %v830 = vld [vmem:[%s2 + $0x50] sm:$0xff]
        %v831 = vld [vmem:[%s2 + $0x58] sm:$0xff]
        %v832 = vld [vmem:[%s2 + $0x60] sm:$0xff]
        %v833 = vld [vmem:[%s2 + $0x68] sm:$0xff]
        %v834 = vld [vmem:[%s2 + $0x70] sm:$0xff]
        %v835 = vld [vmem:[%s2 + $0x78] sm:$0xff]
        %v836 = vld [vmem:[%s6] sm:$0xff]
        %v837 = vld [vmem:[%s6 + $0x8] sm:$0xff]
        %v838 = vld [vmem:[%s6 + $0x10] sm:$0xff]
        %v839 = vld [vmem:[%s6 + $0x18] sm:$0xff]
        %v840 = vld [vmem:[%s6 + $0x20] sm:$0xff]
        %v841 = vld [vmem:[%s6 + $0x28] sm:$0xff]
        %v842 = vld [vmem:[%s6 + $0x30] sm:$0xff]
        %v843 = vld [vmem:[%s6 + $0x38] sm:$0xff]
        %v844 = vld [vmem:[%s6 + $0x40] sm:$0xff]
        %v845 = vld [vmem:[%s6 + $0x48] sm:$0xff]
        %v846 = vld [vmem:[%s6 + $0x50] sm:$0xff]
        %v847 = vld [vmem:[%s6 + $0x58] sm:$0xff]
        %v848 = vld [vmem:[%s6 + $0x60] sm:$0xff]
        %v849 = vld [vmem:[%s6 + $0x68] sm:$0xff]
        %v850 = vld [vmem:[%s6 + $0x70] sm:$0xff]
        %v851 = vld [vmem:[%s6 + $0x78] sm:$0xff]
        %v852 = vld [vmem:[%s5] sm:$0x1]
        %854 = vset.pattern.permute.xlu0 0
        %855 = vperm.xlu0 %854, %v836
        %v856 = vpop.permute.xlu0 %855
        %859 = vset.pattern.permute.xlu0 0
        %860 = vperm.xlu0 %859, %v837
        %v861 = vpop.permute.xlu0 %860
        %864 = vset.pattern.permute.xlu0 0
        %865 = vperm.xlu0 %864, %v838
        %v866 = vpop.permute.xlu0 %865
        %869 = vset.pattern.permute.xlu0 0
        %870 = vperm.xlu0 %869, %v839
        %v871 = vpop.permute.xlu0 %870
        %874 = vset.pattern.permute.xlu0 0
        %875 = vperm.xlu0 %874, %v840
        %v876 = vpop.permute.xlu0 %875
        %879 = vset.pattern.permute.xlu0 0
        %880 = vperm.xlu0 %879, %v841
        %v881 = vpop.permute.xlu0 %880
        %884 = vset.pattern.permute.xlu0 0
        %885 = vperm.xlu0 %884, %v842
        %v886 = vpop.permute.xlu0 %885
        %889 = vset.pattern.permute.xlu0 0
        %890 = vperm.xlu0 %889, %v843
        %v891 = vpop.permute.xlu0 %890
        %894 = vset.pattern.permute.xlu0 0
        %895 = vperm.xlu0 %894, %v844
        %v896 = vpop.permute.xlu0 %895
        %899 = vset.pattern.permute.xlu0 0
        %900 = vperm.xlu0 %899, %v845
        %v901 = vpop.permute.xlu0 %900
        %904 = vset.pattern.permute.xlu0 0
        %905 = vperm.xlu0 %904, %v846
        %v906 = vpop.permute.xlu0 %905
        %909 = vset.pattern.permute.xlu0 0
        %910 = vperm.xlu0 %909, %v847
        %v911 = vpop.permute.xlu0 %910
        %914 = vset.pattern.permute.xlu0 0
        %915 = vperm.xlu0 %914, %v848
        %v916 = vpop.permute.xlu0 %915
        %919 = vset.pattern.permute.xlu0 0
        %920 = vperm.xlu0 %919, %v849
        %v921 = vpop.permute.xlu0 %920
        %924 = vset.pattern.permute.xlu0 0
        %925 = vperm.xlu0 %924, %v850
        %v926 = vpop.permute.xlu0 %925
        %929 = vset.pattern.permute.xlu0 0
        %930 = vperm.xlu0 %929, %v851
        %v931 = vpop.permute.xlu0 %930
        %v934 = vperm.slane %v852, 0
        %v936 = vmul.f32 %v856, %v934
        %v937 = vmul.f32 %v861, %v934
        %v938 = vmul.f32 %v866, %v934
        %v939 = vmul.f32 %v871, %v934
        %v940 = vmul.f32 %v876, %v934
        %v941 = vmul.f32 %v881, %v934
        %v942 = vmul.f32 %v886, %v934
        %v943 = vmul.f32 %v891, %v934
        %v944 = vmul.f32 %v896, %v934
        %v945 = vmul.f32 %v901, %v934
        %v946 = vmul.f32 %v906, %v934
        %v947 = vmul.f32 %v911, %v934
        %v948 = vmul.f32 %v916, %v934
        %v949 = vmul.f32 %v921, %v934
        %v950 = vmul.f32 %v926, %v934
        %v951 = vmul.f32 %v931, %v934
        %v952 = vmul.f32 %v820, %v936
        %v953 = vmul.f32 %v821, %v937
        %v954 = vmul.f32 %v822, %v938
        %v955 = vmul.f32 %v823, %v939
        %v956 = vmul.f32 %v824, %v940
        %v957 = vmul.f32 %v825, %v941
        %v958 = vmul.f32 %v826, %v942
        %v959 = vmul.f32 %v827, %v943
        %v960 = vmul.f32 %v828, %v944
        %v961 = vmul.f32 %v829, %v945
        %v962 = vmul.f32 %v830, %v946
        %v963 = vmul.f32 %v831, %v947
        %v964 = vmul.f32 %v832, %v948
        %v965 = vmul.f32 %v833, %v949
        %v966 = vmul.f32 %v834, %v950
        %v967 = vmul.f32 %v835, %v951
        %v968 = vadd.f32 %v804, %v952
        %v969 = vadd.f32 %v805, %v953
        %v970 = vadd.f32 %v806, %v954
        %v971 = vadd.f32 %v807, %v955
        %v972 = vadd.f32 %v808, %v956
        %v973 = vadd.f32 %v809, %v957
        %v974 = vadd.f32 %v810, %v958
        %v975 = vadd.f32 %v811, %v959
        %v976 = vadd.f32 %v812, %v960
        %v977 = vadd.f32 %v813, %v961
        %v978 = vadd.f32 %v814, %v962
        %v979 = vadd.f32 %v815, %v963
        %v980 = vadd.f32 %v816, %v964
        %v981 = vadd.f32 %v817, %v965
        %v982 = vadd.f32 %v818, %v966
        %v983 = vadd.f32 %v819, %v967
        %v984 = vld [vmem:[%s3] sm:$0xff]
        %v985 = vld [vmem:[%s3 + $0x8] sm:$0xff]
        %v986 = vld [vmem:[%s3 + $0x10] sm:$0xff]
        %v987 = vld [vmem:[%s3 + $0x18] sm:$0xff]
        %v988 = vld [vmem:[%s3 + $0x20] sm:$0xff]
        %v989 = vld [vmem:[%s3 + $0x28] sm:$0xff]
        %v990 = vld [vmem:[%s3 + $0x30] sm:$0xff]
        %v991 = vld [vmem:[%s3 + $0x38] sm:$0xff]
        %v992 = vld [vmem:[%s3 + $0x40] sm:$0xff]
        %v993 = vld [vmem:[%s3 + $0x48] sm:$0xff]
        %v994 = vld [vmem:[%s3 + $0x50] sm:$0xff]
        %v995 = vld [vmem:[%s3 + $0x58] sm:$0xff]
        %v996 = vld [vmem:[%s3 + $0x60] sm:$0xff]
        %v997 = vld [vmem:[%s3 + $0x68] sm:$0xff]
        %v998 = vld [vmem:[%s3 + $0x70] sm:$0xff]
        %v999 = vld [vmem:[%s3 + $0x78] sm:$0xff]
        %v1000 = vld [vmem:[%s4] sm:$0xff]
        %v1001 = vld [vmem:[%s4 + $0x8] sm:$0xff]
        %v1002 = vld [vmem:[%s4 + $0x10] sm:$0xff]
        %v1003 = vld [vmem:[%s4 + $0x18] sm:$0xff]
        %v1004 = vld [vmem:[%s4 + $0x20] sm:$0xff]
        %v1005 = vld [vmem:[%s4 + $0x28] sm:$0xff]
        %v1006 = vld [vmem:[%s4 + $0x30] sm:$0xff]
        %v1007 = vld [vmem:[%s4 + $0x38] sm:$0xff]
        %v1008 = vld [vmem:[%s4 + $0x40] sm:$0xff]
        %v1009 = vld [vmem:[%s4 + $0x48] sm:$0xff]
        %v1010 = vld [vmem:[%s4 + $0x50] sm:$0xff]
        %v1011 = vld [vmem:[%s4 + $0x58] sm:$0xff]
        %v1012 = vld [vmem:[%s4 + $0x60] sm:$0xff]
        %v1013 = vld [vmem:[%s4 + $0x68] sm:$0xff]
        %v1014 = vld [vmem:[%s4 + $0x70] sm:$0xff]
        %v1015 = vld [vmem:[%s4 + $0x78] sm:$0xff]
        %v1016 = vmul.f32 %v1000, %v836
        %v1017 = vmul.f32 %v1001, %v837
        %v1018 = vmul.f32 %v1002, %v838
        %v1019 = vmul.f32 %v1003, %v839
        %v1020 = vmul.f32 %v1004, %v840
        %v1021 = vmul.f32 %v1005, %v841
        %v1022 = vmul.f32 %v1006, %v842
        %v1023 = vmul.f32 %v1007, %v843
        %v1024 = vmul.f32 %v1008, %v844
        %v1025 = vmul.f32 %v1009, %v845
        %v1026 = vmul.f32 %v1010, %v846
        %v1027 = vmul.f32 %v1011, %v847
        %v1028 = vmul.f32 %v1012, %v848
        %v1029 = vmul.f32 %v1013, %v849
        %v1030 = vmul.f32 %v1014, %v850
        %v1031 = vmul.f32 %v1015, %v851
        %v1032 = vadd.f32 %v984, %v1016
        %v1033 = vadd.f32 %v985, %v1017
        %v1034 = vadd.f32 %v986, %v1018
        %v1035 = vadd.f32 %v987, %v1019
        %v1036 = vadd.f32 %v988, %v1020
        %v1037 = vadd.f32 %v989, %v1021
        %v1038 = vadd.f32 %v990, %v1022
        %v1039 = vadd.f32 %v991, %v1023
        %v1040 = vadd.f32 %v992, %v1024
        %v1041 = vadd.f32 %v993, %v1025
        %v1042 = vadd.f32 %v994, %v1026
        %v1043 = vadd.f32 %v995, %v1027
        %v1044 = vadd.f32 %v996, %v1028
        %v1045 = vadd.f32 %v997, %v1029
        %v1046 = vadd.f32 %v998, %v1030
        %v1047 = vadd.f32 %v999, %v1031
        %1049 = vset.pattern.permute.xlu0 0
        %1050 = vperm.xlu0 %1049, %v1032
        %v1051 = vpop.permute.xlu0 %1050
        %1054 = vset.pattern.permute.xlu0 0
        %1055 = vperm.xlu0 %1054, %v1033
        %v1056 = vpop.permute.xlu0 %1055
        %1059 = vset.pattern.permute.xlu0 0
        %1060 = vperm.xlu0 %1059, %v1034
        %v1061 = vpop.permute.xlu0 %1060
        %1064 = vset.pattern.permute.xlu0 0
        %1065 = vperm.xlu0 %1064, %v1035
        %v1066 = vpop.permute.xlu0 %1065
        %1069 = vset.pattern.permute.xlu0 0
        %1070 = vperm.xlu0 %1069, %v1036
        %v1071 = vpop.permute.xlu0 %1070
        %1074 = vset.pattern.permute.xlu0 0
        %1075 = vperm.xlu0 %1074, %v1037
        %v1076 = vpop.permute.xlu0 %1075
        %1079 = vset.pattern.permute.xlu0 0
        %1080 = vperm.xlu0 %1079, %v1038
        %v1081 = vpop.permute.xlu0 %1080
        %1084 = vset.pattern.permute.xlu0 0
        %1085 = vperm.xlu0 %1084, %v1039
        %v1086 = vpop.permute.xlu0 %1085
        %1089 = vset.pattern.permute.xlu0 0
        %1090 = vperm.xlu0 %1089, %v1040
        %v1091 = vpop.permute.xlu0 %1090
        %1094 = vset.pattern.permute.xlu0 0
        %1095 = vperm.xlu0 %1094, %v1041
        %v1096 = vpop.permute.xlu0 %1095
        %1099 = vset.pattern.permute.xlu0 0
        %1100 = vperm.xlu0 %1099, %v1042
        %v1101 = vpop.permute.xlu0 %1100
        %1104 = vset.pattern.permute.xlu0 0
        %1105 = vperm.xlu0 %1104, %v1043
        %v1106 = vpop.permute.xlu0 %1105
        %1109 = vset.pattern.permute.xlu0 0
        %1110 = vperm.xlu0 %1109, %v1044
        %v1111 = vpop.permute.xlu0 %1110
        %1114 = vset.pattern.permute.xlu0 0
        %1115 = vperm.xlu0 %1114, %v1045
        %v1116 = vpop.permute.xlu0 %1115
        %1119 = vset.pattern.permute.xlu0 0
        %1120 = vperm.xlu0 %1119, %v1046
        %v1121 = vpop.permute.xlu0 %1120
        %1124 = vset.pattern.permute.xlu0 0
        %1125 = vperm.xlu0 %1124, %v1047
        %v1126 = vpop.permute.xlu0 %1125
        %vm1128 = vcmask 130048
        %v1130 = vsel %vm1128, %v968, 0
        %v1133 = vsel %vm1128, %v969, 0
        %v1136 = vsel %vm1128, %v970, 0
        %v1139 = vsel %vm1128, %v971, 0
        %v1142 = vsel %vm1128, %v972, 0
        %v1145 = vsel %vm1128, %v973, 0
        %v1148 = vsel %vm1128, %v974, 0
        %v1151 = vsel %vm1128, %v975, 0
        %v1154 = vsel %vm1128, %v976, 0
        %v1157 = vsel %vm1128, %v977, 0
        %v1160 = vsel %vm1128, %v978, 0
        %v1163 = vsel %vm1128, %v979, 0
        %v1166 = vsel %vm1128, %v980, 0
        %v1169 = vsel %vm1128, %v981, 0
        %v1172 = vsel %vm1128, %v982, 0
        %v1175 = vsel %vm1128, %v983, 0
        %1177 = vmatpush.msra.mxu0 0.0
        %1178 = vmatpush.msra.mxu0 0.0
        %1179 = vmatpush.msra.mxu0 0.0
        %1180 = vmatpush.msra.mxu0 0.0
        %1181 = vmatpush.msra.mxu0 0.0
        %1182 = vmatpush.msra.mxu0 0.0
        %1183 = vmatpush.msra.mxu0 0.0
        %1184 = vmatpush.msra.mxu0 0.0
        %1185 = vmatpush.msra.mxu0 0.0
        %1186 = vmatpush.msra.mxu0 0.0
        %1187 = vmatpush.msra.mxu0 0.0
        %1188 = vmatpush.msra.mxu0 0.0
        %1189 = vmatpush.msra.mxu0 0.0
        %1190 = vmatpush.msra.mxu0 0.0
        %1191 = vmatpush.msra.mxu0 %v803
        %1192 = vmatpush.msra.mxu0 %v802
        %1193 = vmatmul.f32.gmra.mxu0 %v1130
        %v1194 = vpop.f32.mrf.mxu0
        %v1195 = vadd.f32 %v1051, %v1194
        %1196 = vmatmul.f32.gmra.mxu0 %v1133
        %v1197 = vpop.f32.mrf.mxu0
        %v1198 = vadd.f32 %v1056, %v1197
        %1199 = vmatmul.f32.gmra.mxu0 %v1136
        %v1200 = vpop.f32.mrf.mxu0
        %v1201 = vadd.f32 %v1061, %v1200
        %1202 = vmatmul.f32.gmra.mxu0 %v1139
        %v1203 = vpop.f32.mrf.mxu0
        %v1204 = vadd.f32 %v1066, %v1203
        %1205 = vmatmul.f32.gmra.mxu0 %v1142
        %v1206 = vpop.f32.mrf.mxu0
        %v1207 = vadd.f32 %v1071, %v1206
        %1208 = vmatmul.f32.gmra.mxu0 %v1145
        %v1209 = vpop.f32.mrf.mxu0
        %v1210 = vadd.f32 %v1076, %v1209
        %1211 = vmatmul.f32.gmra.mxu0 %v1148
        %v1212 = vpop.f32.mrf.mxu0
        %v1213 = vadd.f32 %v1081, %v1212
        %1214 = vmatmul.f32.gmra.mxu0 %v1151
        %v1215 = vpop.f32.mrf.mxu0
        %v1216 = vadd.f32 %v1086, %v1215
        %1217 = vmatmul.f32.gmra.mxu0 %v1154
        %v1218 = vpop.f32.mrf.mxu0
        %v1219 = vadd.f32 %v1091, %v1218
        %1220 = vmatmul.f32.gmra.mxu0 %v1157
        %v1221 = vpop.f32.mrf.mxu0
        %v1222 = vadd.f32 %v1096, %v1221
        %1223 = vmatmul.f32.gmra.mxu0 %v1160
        %v1224 = vpop.f32.mrf.mxu0
        %v1225 = vadd.f32 %v1101, %v1224
        %1226 = vmatmul.f32.gmra.mxu0 %v1163
        %v1227 = vpop.f32.mrf.mxu0
        %v1228 = vadd.f32 %v1106, %v1227
        %1229 = vmatmul.f32.gmra.mxu0 %v1166
        %v1230 = vpop.f32.mrf.mxu0
        %v1231 = vadd.f32 %v1111, %v1230
        %1232 = vmatmul.f32.gmra.mxu0 %v1169
        %v1233 = vpop.f32.mrf.mxu0
        %v1234 = vadd.f32 %v1116, %v1233
        %1235 = vmatmul.f32.gmra.mxu0 %v1172
        %v1236 = vpop.f32.mrf.mxu0
        %v1237 = vadd.f32 %v1121, %v1236
        %1238 = vmatmul.f32.gmra.mxu0 %v1175
        %v1239 = vpop.f32.mrf.mxu0
        %v1240 = vadd.f32 %v1126, %v1239
        %1241 = vdwg.mxu0
        %v1242 = vmax.f32 %v1195, 0.0
        %v1243 = vmax.f32 %v1198, 0.0
        %v1244 = vmax.f32 %v1201, 0.0
        %v1245 = vmax.f32 %v1204, 0.0
        %v1246 = vmax.f32 %v1207, 0.0
        %v1247 = vmax.f32 %v1210, 0.0
        %v1248 = vmax.f32 %v1213, 0.0
        %v1249 = vmax.f32 %v1216, 0.0
        %v1250 = vmax.f32 %v1219, 0.0
        %v1251 = vmax.f32 %v1222, 0.0
        %v1252 = vmax.f32 %v1225, 0.0
        %v1253 = vmax.f32 %v1228, 0.0
        %v1254 = vmax.f32 %v1231, 0.0
        %v1255 = vmax.f32 %v1234, 0.0
        %v1256 = vmax.f32 %v1237, 0.0
        %v1257 = vmax.f32 %v1240, 0.0
        %v1258 = vld [vmem:[%s7] sm:$0xff]
        %v1259 = vld [vmem:[%s7 + $0x8] sm:$0xff]
        %v1260 = vld [vmem:[%s7 + $0x10] sm:$0xff]
        %v1261 = vld [vmem:[%s7 + $0x18] sm:$0xff]
        %v1262 = vld [vmem:[%s7 + $0x20] sm:$0xff]
        %v1263 = vld [vmem:[%s7 + $0x28] sm:$0xff]
        %v1264 = vld [vmem:[%s7 + $0x30] sm:$0xff]
        %v1265 = vld [vmem:[%s7 + $0x38] sm:$0xff]
        %v1266 = vld [vmem:[%s7 + $0x40] sm:$0xff]
        %v1267 = vld [vmem:[%s7 + $0x48] sm:$0xff]
        %v1268 = vld [vmem:[%s7 + $0x50] sm:$0xff]
        %v1269 = vld [vmem:[%s7 + $0x58] sm:$0xff]
        %v1270 = vld [vmem:[%s7 + $0x60] sm:$0xff]
        %v1271 = vld [vmem:[%s7 + $0x68] sm:$0xff]
        %v1272 = vld [vmem:[%s7 + $0x70] sm:$0xff]
        %v1273 = vld [vmem:[%s7 + $0x78] sm:$0xff]
        %v1274 = vld [vmem:[%s8] sm:$0xff]
        %v1275 = vld [vmem:[%s8 + $0x8] sm:$0xff]
        %v1276 = vld [vmem:[%s8 + $0x10] sm:$0xff]
        %v1277 = vld [vmem:[%s8 + $0x18] sm:$0xff]
        %v1278 = vld [vmem:[%s8 + $0x20] sm:$0xff]
        %v1279 = vld [vmem:[%s8 + $0x28] sm:$0xff]
        %v1280 = vld [vmem:[%s8 + $0x30] sm:$0xff]
        %v1281 = vld [vmem:[%s8 + $0x38] sm:$0xff]
        %v1282 = vld [vmem:[%s8 + $0x40] sm:$0xff]
        %v1283 = vld [vmem:[%s8 + $0x48] sm:$0xff]
        %v1284 = vld [vmem:[%s8 + $0x50] sm:$0xff]
        %v1285 = vld [vmem:[%s8 + $0x58] sm:$0xff]
        %v1286 = vld [vmem:[%s8 + $0x60] sm:$0xff]
        %v1287 = vld [vmem:[%s8 + $0x68] sm:$0xff]
        %v1288 = vld [vmem:[%s8 + $0x70] sm:$0xff]
        %v1289 = vld [vmem:[%s8 + $0x78] sm:$0xff]
        %v1290 = vld [vmem:[%s12] sm:$0xff]
        %v1291 = vld [vmem:[%s12 + $0x8] sm:$0xff]
        %v1292 = vld [vmem:[%s12 + $0x10] sm:$0xff]
        %v1293 = vld [vmem:[%s12 + $0x18] sm:$0xff]
        %v1294 = vld [vmem:[%s12 + $0x20] sm:$0xff]
        %v1295 = vld [vmem:[%s12 + $0x28] sm:$0xff]
        %v1296 = vld [vmem:[%s12 + $0x30] sm:$0xff]
        %v1297 = vld [vmem:[%s12 + $0x38] sm:$0xff]
        %v1298 = vld [vmem:[%s12 + $0x40] sm:$0xff]
        %v1299 = vld [vmem:[%s12 + $0x48] sm:$0xff]
        %v1300 = vld [vmem:[%s12 + $0x50] sm:$0xff]
        %v1301 = vld [vmem:[%s12 + $0x58] sm:$0xff]
        %v1302 = vld [vmem:[%s12 + $0x60] sm:$0xff]
        %v1303 = vld [vmem:[%s12 + $0x68] sm:$0xff]
        %v1304 = vld [vmem:[%s12 + $0x70] sm:$0xff]
        %v1305 = vld [vmem:[%s12 + $0x78] sm:$0xff]
        %v1306 = vld [vmem:[%s11] sm:$0x1]
        %1308 = vset.pattern.permute.xlu0 0
        %1309 = vperm.xlu0 %1308, %v1290
        %v1310 = vpop.permute.xlu0 %1309
        %1313 = vset.pattern.permute.xlu0 0
        %1314 = vperm.xlu0 %1313, %v1291
        %v1315 = vpop.permute.xlu0 %1314
        %1318 = vset.pattern.permute.xlu0 0
        %1319 = vperm.xlu0 %1318, %v1292
        %v1320 = vpop.permute.xlu0 %1319
        %1323 = vset.pattern.permute.xlu0 0
        %1324 = vperm.xlu0 %1323, %v1293
        %v1325 = vpop.permute.xlu0 %1324
        %1328 = vset.pattern.permute.xlu0 0
        %1329 = vperm.xlu0 %1328, %v1294
        %v1330 = vpop.permute.xlu0 %1329
        %1333 = vset.pattern.permute.xlu0 0
        %1334 = vperm.xlu0 %1333, %v1295
        %v1335 = vpop.permute.xlu0 %1334
        %1338 = vset.pattern.permute.xlu0 0
        %1339 = vperm.xlu0 %1338, %v1296
        %v1340 = vpop.permute.xlu0 %1339
        %1343 = vset.pattern.permute.xlu0 0
        %1344 = vperm.xlu0 %1343, %v1297
        %v1345 = vpop.permute.xlu0 %1344
        %1348 = vset.pattern.permute.xlu0 0
        %1349 = vperm.xlu0 %1348, %v1298
        %v1350 = vpop.permute.xlu0 %1349
        %1353 = vset.pattern.permute.xlu0 0
        %1354 = vperm.xlu0 %1353, %v1299
        %v1355 = vpop.permute.xlu0 %1354
        %1358 = vset.pattern.permute.xlu0 0
        %1359 = vperm.xlu0 %1358, %v1300
        %v1360 = vpop.permute.xlu0 %1359
        %1363 = vset.pattern.permute.xlu0 0
        %1364 = vperm.xlu0 %1363, %v1301
        %v1365 = vpop.permute.xlu0 %1364
        %1368 = vset.pattern.permute.xlu0 0
        %1369 = vperm.xlu0 %1368, %v1302
        %v1370 = vpop.permute.xlu0 %1369
        %1373 = vset.pattern.permute.xlu0 0
        %1374 = vperm.xlu0 %1373, %v1303
        %v1375 = vpop.permute.xlu0 %1374
        %1378 = vset.pattern.permute.xlu0 0
        %1379 = vperm.xlu0 %1378, %v1304
        %v1380 = vpop.permute.xlu0 %1379
        %1383 = vset.pattern.permute.xlu0 0
        %1384 = vperm.xlu0 %1383, %v1305
        %v1385 = vpop.permute.xlu0 %1384
        %v1388 = vperm.slane %v1306, 0
        %v1390 = vmul.f32 %v1310, %v1388
        %v1391 = vmul.f32 %v1315, %v1388
        %v1392 = vmul.f32 %v1320, %v1388
        %v1393 = vmul.f32 %v1325, %v1388
        %v1394 = vmul.f32 %v1330, %v1388
        %v1395 = vmul.f32 %v1335, %v1388
        %v1396 = vmul.f32 %v1340, %v1388
        %v1397 = vmul.f32 %v1345, %v1388
        %v1398 = vmul.f32 %v1350, %v1388
        %v1399 = vmul.f32 %v1355, %v1388
        %v1400 = vmul.f32 %v1360, %v1388
        %v1401 = vmul.f32 %v1365, %v1388
        %v1402 = vmul.f32 %v1370, %v1388
        %v1403 = vmul.f32 %v1375, %v1388
        %v1404 = vmul.f32 %v1380, %v1388
        %v1405 = vmul.f32 %v1385, %v1388
        %v1406 = vmul.f32 %v1274, %v1390
        %v1407 = vmul.f32 %v1275, %v1391
        %v1408 = vmul.f32 %v1276, %v1392
        %v1409 = vmul.f32 %v1277, %v1393
        %v1410 = vmul.f32 %v1278, %v1394
        %v1411 = vmul.f32 %v1279, %v1395
        %v1412 = vmul.f32 %v1280, %v1396
        %v1413 = vmul.f32 %v1281, %v1397
        %v1414 = vmul.f32 %v1282, %v1398
        %v1415 = vmul.f32 %v1283, %v1399
        %v1416 = vmul.f32 %v1284, %v1400
        %v1417 = vmul.f32 %v1285, %v1401
        %v1418 = vmul.f32 %v1286, %v1402
        %v1419 = vmul.f32 %v1287, %v1403
        %v1420 = vmul.f32 %v1288, %v1404
        %v1421 = vmul.f32 %v1289, %v1405
        %v1422 = vadd.f32 %v1258, %v1406
        %v1423 = vadd.f32 %v1259, %v1407
        %v1424 = vadd.f32 %v1260, %v1408
        %v1425 = vadd.f32 %v1261, %v1409
        %v1426 = vadd.f32 %v1262, %v1410
        %v1427 = vadd.f32 %v1263, %v1411
        %v1428 = vadd.f32 %v1264, %v1412
        %v1429 = vadd.f32 %v1265, %v1413
        %v1430 = vadd.f32 %v1266, %v1414
        %v1431 = vadd.f32 %v1267, %v1415
        %v1432 = vadd.f32 %v1268, %v1416
        %v1433 = vadd.f32 %v1269, %v1417
        %v1434 = vadd.f32 %v1270, %v1418
        %v1435 = vadd.f32 %v1271, %v1419
        %v1436 = vadd.f32 %v1272, %v1420
        %v1437 = vadd.f32 %v1273, %v1421
        %v1438 = vld [vmem:[%s9] sm:$0xff]
        %v1439 = vld [vmem:[%s9 + $0x8] sm:$0xff]
        %v1440 = vld [vmem:[%s9 + $0x10] sm:$0xff]
        %v1441 = vld [vmem:[%s9 + $0x18] sm:$0xff]
        %v1442 = vld [vmem:[%s9 + $0x20] sm:$0xff]
        %v1443 = vld [vmem:[%s9 + $0x28] sm:$0xff]
        %v1444 = vld [vmem:[%s9 + $0x30] sm:$0xff]
        %v1445 = vld [vmem:[%s9 + $0x38] sm:$0xff]
        %v1446 = vld [vmem:[%s9 + $0x40] sm:$0xff]
        %v1447 = vld [vmem:[%s9 + $0x48] sm:$0xff]
        %v1448 = vld [vmem:[%s9 + $0x50] sm:$0xff]
        %v1449 = vld [vmem:[%s9 + $0x58] sm:$0xff]
        %v1450 = vld [vmem:[%s9 + $0x60] sm:$0xff]
        %v1451 = vld [vmem:[%s9 + $0x68] sm:$0xff]
        %v1452 = vld [vmem:[%s9 + $0x70] sm:$0xff]
        %v1453 = vld [vmem:[%s9 + $0x78] sm:$0xff]
        %v1454 = vld [vmem:[%s10] sm:$0xff]
        %v1455 = vld [vmem:[%s10 + $0x8] sm:$0xff]
        %v1456 = vld [vmem:[%s10 + $0x10] sm:$0xff]
        %v1457 = vld [vmem:[%s10 + $0x18] sm:$0xff]
        %v1458 = vld [vmem:[%s10 + $0x20] sm:$0xff]
        %v1459 = vld [vmem:[%s10 + $0x28] sm:$0xff]
        %v1460 = vld [vmem:[%s10 + $0x30] sm:$0xff]
        %v1461 = vld [vmem:[%s10 + $0x38] sm:$0xff]
        %v1462 = vld [vmem:[%s10 + $0x40] sm:$0xff]
        %v1463 = vld [vmem:[%s10 + $0x48] sm:$0xff]
        %v1464 = vld [vmem:[%s10 + $0x50] sm:$0xff]
        %v1465 = vld [vmem:[%s10 + $0x58] sm:$0xff]
        %v1466 = vld [vmem:[%s10 + $0x60] sm:$0xff]
        %v1467 = vld [vmem:[%s10 + $0x68] sm:$0xff]
        %v1468 = vld [vmem:[%s10 + $0x70] sm:$0xff]
        %v1469 = vld [vmem:[%s10 + $0x78] sm:$0xff]
        %v1470 = vmul.f32 %v1454, %v1290
        %v1471 = vmul.f32 %v1455, %v1291
        %v1472 = vmul.f32 %v1456, %v1292
        %v1473 = vmul.f32 %v1457, %v1293
        %v1474 = vmul.f32 %v1458, %v1294
        %v1475 = vmul.f32 %v1459, %v1295
        %v1476 = vmul.f32 %v1460, %v1296
        %v1477 = vmul.f32 %v1461, %v1297
        %v1478 = vmul.f32 %v1462, %v1298
        %v1479 = vmul.f32 %v1463, %v1299
        %v1480 = vmul.f32 %v1464, %v1300
        %v1481 = vmul.f32 %v1465, %v1301
        %v1482 = vmul.f32 %v1466, %v1302
        %v1483 = vmul.f32 %v1467, %v1303
        %v1484 = vmul.f32 %v1468, %v1304
        %v1485 = vmul.f32 %v1469, %v1305
        %v1486 = vadd.f32 %v1438, %v1470
        %v1487 = vadd.f32 %v1439, %v1471
        %v1488 = vadd.f32 %v1440, %v1472
        %v1489 = vadd.f32 %v1441, %v1473
        %v1490 = vadd.f32 %v1442, %v1474
        %v1491 = vadd.f32 %v1443, %v1475
        %v1492 = vadd.f32 %v1444, %v1476
        %v1493 = vadd.f32 %v1445, %v1477
        %v1494 = vadd.f32 %v1446, %v1478
        %v1495 = vadd.f32 %v1447, %v1479
        %v1496 = vadd.f32 %v1448, %v1480
        %v1497 = vadd.f32 %v1449, %v1481
        %v1498 = vadd.f32 %v1450, %v1482
        %v1499 = vadd.f32 %v1451, %v1483
        %v1500 = vadd.f32 %v1452, %v1484
        %v1501 = vadd.f32 %v1453, %v1485
        %1503 = vset.pattern.permute.xlu0 0
        %1504 = vperm.xlu0 %1503, %v1486
        %v1505 = vpop.permute.xlu0 %1504
        %1508 = vset.pattern.permute.xlu0 0
        %1509 = vperm.xlu0 %1508, %v1487
        %v1510 = vpop.permute.xlu0 %1509
        %1513 = vset.pattern.permute.xlu0 0
        %1514 = vperm.xlu0 %1513, %v1488
        %v1515 = vpop.permute.xlu0 %1514
        %1518 = vset.pattern.permute.xlu0 0
        %1519 = vperm.xlu0 %1518, %v1489
        %v1520 = vpop.permute.xlu0 %1519
        %1523 = vset.pattern.permute.xlu0 0
        %1524 = vperm.xlu0 %1523, %v1490
        %v1525 = vpop.permute.xlu0 %1524
        %1528 = vset.pattern.permute.xlu0 0
        %1529 = vperm.xlu0 %1528, %v1491
        %v1530 = vpop.permute.xlu0 %1529
        %1533 = vset.pattern.permute.xlu0 0
        %1534 = vperm.xlu0 %1533, %v1492
        %v1535 = vpop.permute.xlu0 %1534
        %1538 = vset.pattern.permute.xlu0 0
        %1539 = vperm.xlu0 %1538, %v1493
        %v1540 = vpop.permute.xlu0 %1539
        %1543 = vset.pattern.permute.xlu0 0
        %1544 = vperm.xlu0 %1543, %v1494
        %v1545 = vpop.permute.xlu0 %1544
        %1548 = vset.pattern.permute.xlu0 0
        %1549 = vperm.xlu0 %1548, %v1495
        %v1550 = vpop.permute.xlu0 %1549
        %1553 = vset.pattern.permute.xlu0 0
        %1554 = vperm.xlu0 %1553, %v1496
        %v1555 = vpop.permute.xlu0 %1554
        %1558 = vset.pattern.permute.xlu0 0
        %1559 = vperm.xlu0 %1558, %v1497
        %v1560 = vpop.permute.xlu0 %1559
        %1563 = vset.pattern.permute.xlu0 0
        %1564 = vperm.xlu0 %1563, %v1498
        %v1565 = vpop.permute.xlu0 %1564
        %1568 = vset.pattern.permute.xlu0 0
        %1569 = vperm.xlu0 %1568, %v1499
        %v1570 = vpop.permute.xlu0 %1569
        %1573 = vset.pattern.permute.xlu0 0
        %1574 = vperm.xlu0 %1573, %v1500
        %v1575 = vpop.permute.xlu0 %1574
        %1578 = vset.pattern.permute.xlu0 0
        %1579 = vperm.xlu0 %1578, %v1501
        %v1580 = vpop.permute.xlu0 %1579
        %1582 = vmatpush.msra.mxu0 %v1257
        %1583 = vmatpush.msra.mxu0 %v1256
        %1584 = vmatpush.msra.mxu0 %v1255
        %1585 = vmatpush.msra.mxu0 %v1254
        %1586 = vmatpush.msra.mxu0 %v1253
        %1587 = vmatpush.msra.mxu0 %v1252
        %1588 = vmatpush.msra.mxu0 %v1251
        %1589 = vmatpush.msra.mxu0 %v1250
        %1590 = vmatpush.msra.mxu0 %v1249
        %1591 = vmatpush.msra.mxu0 %v1248
        %1592 = vmatpush.msra.mxu0 %v1247
        %1593 = vmatpush.msra.mxu0 %v1246
        %1594 = vmatpush.msra.mxu0 %v1245
        %1595 = vmatpush.msra.mxu0 %v1244
        %1596 = vmatpush.msra.mxu0 %v1243
        %1597 = vmatpush.msra.mxu0 %v1242
        %1598 = vmatmul.f32.gmra.mxu0 %v1422
        %v1599 = vpop.f32.mrf.mxu0
        %v1600 = vadd.f32 %v1505, %v1599
        %1601 = vmatmul.f32.gmra.mxu0 %v1423
        %v1602 = vpop.f32.mrf.mxu0
        %v1603 = vadd.f32 %v1510, %v1602
        %1604 = vmatmul.f32.gmra.mxu0 %v1424
        %v1605 = vpop.f32.mrf.mxu0
        %v1606 = vadd.f32 %v1515, %v1605
        %1607 = vmatmul.f32.gmra.mxu0 %v1425
        %v1608 = vpop.f32.mrf.mxu0
        %v1609 = vadd.f32 %v1520, %v1608
        %1610 = vmatmul.f32.gmra.mxu0 %v1426
        %v1611 = vpop.f32.mrf.mxu0
        %v1612 = vadd.f32 %v1525, %v1611
        %1613 = vmatmul.f32.gmra.mxu0 %v1427
        %v1614 = vpop.f32.mrf.mxu0
        %v1615 = vadd.f32 %v1530, %v1614
        %1616 = vmatmul.f32.gmra.mxu0 %v1428
        %v1617 = vpop.f32.mrf.mxu0
        %v1618 = vadd.f32 %v1535, %v1617
        %1619 = vmatmul.f32.gmra.mxu0 %v1429
        %v1620 = vpop.f32.mrf.mxu0
        %v1621 = vadd.f32 %v1540, %v1620
        %1622 = vmatmul.f32.gmra.mxu0 %v1430
        %v1623 = vpop.f32.mrf.mxu0
        %v1624 = vadd.f32 %v1545, %v1623
        %1625 = vmatmul.f32.gmra.mxu0 %v1431
        %v1626 = vpop.f32.mrf.mxu0
        %v1627 = vadd.f32 %v1550, %v1626
        %1628 = vmatmul.f32.gmra.mxu0 %v1432
        %v1629 = vpop.f32.mrf.mxu0
        %v1630 = vadd.f32 %v1555, %v1629
        %1631 = vmatmul.f32.gmra.mxu0 %v1433
        %v1632 = vpop.f32.mrf.mxu0
        %v1633 = vadd.f32 %v1560, %v1632
        %1634 = vmatmul.f32.gmra.mxu0 %v1434
        %v1635 = vpop.f32.mrf.mxu0
        %v1636 = vadd.f32 %v1565, %v1635
        %1637 = vmatmul.f32.gmra.mxu0 %v1435
        %v1638 = vpop.f32.mrf.mxu0
        %v1639 = vadd.f32 %v1570, %v1638
        %1640 = vmatmul.f32.gmra.mxu0 %v1436
        %v1641 = vpop.f32.mrf.mxu0
        %v1642 = vadd.f32 %v1575, %v1641
        %1643 = vmatmul.f32.gmra.mxu0 %v1437
        %v1644 = vpop.f32.mrf.mxu0
        %v1645 = vadd.f32 %v1580, %v1644
        %1646 = vdwg.mxu0
        %v1647 = vmax.f32 %v1600, 0.0
        %v1648 = vmax.f32 %v1603, 0.0
        %v1649 = vmax.f32 %v1606, 0.0
        %v1650 = vmax.f32 %v1609, 0.0
        %v1651 = vmax.f32 %v1612, 0.0
        %v1652 = vmax.f32 %v1615, 0.0
        %v1653 = vmax.f32 %v1618, 0.0
        %v1654 = vmax.f32 %v1621, 0.0
        %v1655 = vmax.f32 %v1624, 0.0
        %v1656 = vmax.f32 %v1627, 0.0
        %v1657 = vmax.f32 %v1630, 0.0
        %v1658 = vmax.f32 %v1633, 0.0
        %v1659 = vmax.f32 %v1636, 0.0
        %v1660 = vmax.f32 %v1639, 0.0
        %v1661 = vmax.f32 %v1642, 0.0
        %v1662 = vmax.f32 %v1645, 0.0
        %v1663 = vld [vmem:[%s13] sm:$0xff]
        %v1664 = vld [vmem:[%s13 + $0x8] sm:$0xff]
        %v1665 = vld [vmem:[%s13 + $0x10] sm:$0xff]
        %v1666 = vld [vmem:[%s13 + $0x18] sm:$0xff]
        %v1667 = vld [vmem:[%s13 + $0x20] sm:$0xff]
        %v1668 = vld [vmem:[%s13 + $0x28] sm:$0xff]
        %v1669 = vld [vmem:[%s13 + $0x30] sm:$0xff]
        %v1670 = vld [vmem:[%s13 + $0x38] sm:$0xff]
        %v1671 = vld [vmem:[%s13 + $0x40] sm:$0xff]
        %v1672 = vld [vmem:[%s13 + $0x48] sm:$0xff]
        %v1673 = vld [vmem:[%s13 + $0x50] sm:$0xff]
        %v1674 = vld [vmem:[%s13 + $0x58] sm:$0xff]
        %v1675 = vld [vmem:[%s13 + $0x60] sm:$0xff]
        %v1676 = vld [vmem:[%s13 + $0x68] sm:$0xff]
        %v1677 = vld [vmem:[%s13 + $0x70] sm:$0xff]
        %v1678 = vld [vmem:[%s13 + $0x78] sm:$0xff]
        %v1679 = vld [vmem:[%s14] sm:$0xff]
        %v1680 = vld [vmem:[%s14 + $0x8] sm:$0xff]
        %v1681 = vld [vmem:[%s14 + $0x10] sm:$0xff]
        %v1682 = vld [vmem:[%s14 + $0x18] sm:$0xff]
        %v1683 = vld [vmem:[%s14 + $0x20] sm:$0xff]
        %v1684 = vld [vmem:[%s14 + $0x28] sm:$0xff]
        %v1685 = vld [vmem:[%s14 + $0x30] sm:$0xff]
        %v1686 = vld [vmem:[%s14 + $0x38] sm:$0xff]
        %v1687 = vld [vmem:[%s14 + $0x40] sm:$0xff]
        %v1688 = vld [vmem:[%s14 + $0x48] sm:$0xff]
        %v1689 = vld [vmem:[%s14 + $0x50] sm:$0xff]
        %v1690 = vld [vmem:[%s14 + $0x58] sm:$0xff]
        %v1691 = vld [vmem:[%s14 + $0x60] sm:$0xff]
        %v1692 = vld [vmem:[%s14 + $0x68] sm:$0xff]
        %v1693 = vld [vmem:[%s14 + $0x70] sm:$0xff]
        %v1694 = vld [vmem:[%s14 + $0x78] sm:$0xff]
        %v1695 = vld [vmem:[%s18] sm:$0xff]
        %v1696 = vld [vmem:[%s18 + $0x8] sm:$0xff]
        %v1697 = vld [vmem:[%s18 + $0x10] sm:$0xff]
        %v1698 = vld [vmem:[%s18 + $0x18] sm:$0xff]
        %v1699 = vld [vmem:[%s18 + $0x20] sm:$0xff]
        %v1700 = vld [vmem:[%s18 + $0x28] sm:$0xff]
        %v1701 = vld [vmem:[%s18 + $0x30] sm:$0xff]
        %v1702 = vld [vmem:[%s18 + $0x38] sm:$0xff]
        %v1703 = vld [vmem:[%s18 + $0x40] sm:$0xff]
        %v1704 = vld [vmem:[%s18 + $0x48] sm:$0xff]
        %v1705 = vld [vmem:[%s18 + $0x50] sm:$0xff]
        %v1706 = vld [vmem:[%s18 + $0x58] sm:$0xff]
        %v1707 = vld [vmem:[%s18 + $0x60] sm:$0xff]
        %v1708 = vld [vmem:[%s18 + $0x68] sm:$0xff]
        %v1709 = vld [vmem:[%s18 + $0x70] sm:$0xff]
        %v1710 = vld [vmem:[%s18 + $0x78] sm:$0xff]
        %v1711 = vld [vmem:[%s17] sm:$0x1]
        %1713 = vset.pattern.permute.xlu0 0
        %1714 = vperm.xlu0 %1713, %v1695
        %v1715 = vpop.permute.xlu0 %1714
        %1718 = vset.pattern.permute.xlu0 0
        %1719 = vperm.xlu0 %1718, %v1696
        %v1720 = vpop.permute.xlu0 %1719
        %1723 = vset.pattern.permute.xlu0 0
        %1724 = vperm.xlu0 %1723, %v1697
        %v1725 = vpop.permute.xlu0 %1724
        %1728 = vset.pattern.permute.xlu0 0
        %1729 = vperm.xlu0 %1728, %v1698
        %v1730 = vpop.permute.xlu0 %1729
        %1733 = vset.pattern.permute.xlu0 0
        %1734 = vperm.xlu0 %1733, %v1699
        %v1735 = vpop.permute.xlu0 %1734
        %1738 = vset.pattern.permute.xlu0 0
        %1739 = vperm.xlu0 %1738, %v1700
        %v1740 = vpop.permute.xlu0 %1739
        %1743 = vset.pattern.permute.xlu0 0
        %1744 = vperm.xlu0 %1743, %v1701
        %v1745 = vpop.permute.xlu0 %1744
        %1748 = vset.pattern.permute.xlu0 0
        %1749 = vperm.xlu0 %1748, %v1702
        %v1750 = vpop.permute.xlu0 %1749
        %1753 = vset.pattern.permute.xlu0 0
        %1754 = vperm.xlu0 %1753, %v1703
        %v1755 = vpop.permute.xlu0 %1754
        %1758 = vset.pattern.permute.xlu0 0
        %1759 = vperm.xlu0 %1758, %v1704
        %v1760 = vpop.permute.xlu0 %1759
        %1763 = vset.pattern.permute.xlu0 0
        %1764 = vperm.xlu0 %1763, %v1705
        %v1765 = vpop.permute.xlu0 %1764
        %1768 = vset.pattern.permute.xlu0 0
        %1769 = vperm.xlu0 %1768, %v1706
        %v1770 = vpop.permute.xlu0 %1769
        %1773 = vset.pattern.permute.xlu0 0
        %1774 = vperm.xlu0 %1773, %v1707
        %v1775 = vpop.permute.xlu0 %1774
        %1778 = vset.pattern.permute.xlu0 0
        %1779 = vperm.xlu0 %1778, %v1708
        %v1780 = vpop.permute.xlu0 %1779
        %1783 = vset.pattern.permute.xlu0 0
        %1784 = vperm.xlu0 %1783, %v1709
        %v1785 = vpop.permute.xlu0 %1784
        %1788 = vset.pattern.permute.xlu0 0
        %1789 = vperm.xlu0 %1788, %v1710
        %v1790 = vpop.permute.xlu0 %1789
        %v1793 = vperm.slane %v1711, 0
        %v1795 = vmul.f32 %v1715, %v1793
        %v1796 = vmul.f32 %v1720, %v1793
        %v1797 = vmul.f32 %v1725, %v1793
        %v1798 = vmul.f32 %v1730, %v1793
        %v1799 = vmul.f32 %v1735, %v1793
        %v1800 = vmul.f32 %v1740, %v1793
        %v1801 = vmul.f32 %v1745, %v1793
        %v1802 = vmul.f32 %v1750, %v1793
        %v1803 = vmul.f32 %v1755, %v1793
        %v1804 = vmul.f32 %v1760, %v1793
        %v1805 = vmul.f32 %v1765, %v1793
        %v1806 = vmul.f32 %v1770, %v1793
        %v1807 = vmul.f32 %v1775, %v1793
        %v1808 = vmul.f32 %v1780, %v1793
        %v1809 = vmul.f32 %v1785, %v1793
        %v1810 = vmul.f32 %v1790, %v1793
        %v1811 = vmul.f32 %v1679, %v1795
        %v1812 = vmul.f32 %v1680, %v1796
        %v1813 = vmul.f32 %v1681, %v1797
        %v1814 = vmul.f32 %v1682, %v1798
        %v1815 = vmul.f32 %v1683, %v1799
        %v1816 = vmul.f32 %v1684, %v1800
        %v1817 = vmul.f32 %v1685, %v1801
        %v1818 = vmul.f32 %v1686, %v1802
        %v1819 = vmul.f32 %v1687, %v1803
        %v1820 = vmul.f32 %v1688, %v1804
        %v1821 = vmul.f32 %v1689, %v1805
        %v1822 = vmul.f32 %v1690, %v1806
        %v1823 = vmul.f32 %v1691, %v1807
        %v1824 = vmul.f32 %v1692, %v1808
        %v1825 = vmul.f32 %v1693, %v1809
        %v1826 = vmul.f32 %v1694, %v1810
        %v1827 = vadd.f32 %v1663, %v1811
        %v1828 = vadd.f32 %v1664, %v1812
        %v1829 = vadd.f32 %v1665, %v1813
        %v1830 = vadd.f32 %v1666, %v1814
        %v1831 = vadd.f32 %v1667, %v1815
        %v1832 = vadd.f32 %v1668, %v1816
        %v1833 = vadd.f32 %v1669, %v1817
        %v1834 = vadd.f32 %v1670, %v1818
        %v1835 = vadd.f32 %v1671, %v1819
        %v1836 = vadd.f32 %v1672, %v1820
        %v1837 = vadd.f32 %v1673, %v1821
        %v1838 = vadd.f32 %v1674, %v1822
        %v1839 = vadd.f32 %v1675, %v1823
        %v1840 = vadd.f32 %v1676, %v1824
        %v1841 = vadd.f32 %v1677, %v1825
        %v1842 = vadd.f32 %v1678, %v1826
        %v1843 = vld [vmem:[%s15] sm:$0xff]
        %v1844 = vld [vmem:[%s15 + $0x8] sm:$0xff]
        %v1845 = vld [vmem:[%s15 + $0x10] sm:$0xff]
        %v1846 = vld [vmem:[%s15 + $0x18] sm:$0xff]
        %v1847 = vld [vmem:[%s15 + $0x20] sm:$0xff]
        %v1848 = vld [vmem:[%s15 + $0x28] sm:$0xff]
        %v1849 = vld [vmem:[%s15 + $0x30] sm:$0xff]
        %v1850 = vld [vmem:[%s15 + $0x38] sm:$0xff]
        %v1851 = vld [vmem:[%s15 + $0x40] sm:$0xff]
        %v1852 = vld [vmem:[%s15 + $0x48] sm:$0xff]
        %v1853 = vld [vmem:[%s15 + $0x50] sm:$0xff]
        %v1854 = vld [vmem:[%s15 + $0x58] sm:$0xff]
        %v1855 = vld [vmem:[%s15 + $0x60] sm:$0xff]
        %v1856 = vld [vmem:[%s15 + $0x68] sm:$0xff]
        %v1857 = vld [vmem:[%s15 + $0x70] sm:$0xff]
        %v1858 = vld [vmem:[%s15 + $0x78] sm:$0xff]
        %v1859 = vld [vmem:[%s16] sm:$0xff]
        %v1860 = vld [vmem:[%s16 + $0x8] sm:$0xff]
        %v1861 = vld [vmem:[%s16 + $0x10] sm:$0xff]
        %v1862 = vld [vmem:[%s16 + $0x18] sm:$0xff]
        %v1863 = vld [vmem:[%s16 + $0x20] sm:$0xff]
        %v1864 = vld [vmem:[%s16 + $0x28] sm:$0xff]
        %v1865 = vld [vmem:[%s16 + $0x30] sm:$0xff]
        %v1866 = vld [vmem:[%s16 + $0x38] sm:$0xff]
        %v1867 = vld [vmem:[%s16 + $0x40] sm:$0xff]
        %v1868 = vld [vmem:[%s16 + $0x48] sm:$0xff]
        %v1869 = vld [vmem:[%s16 + $0x50] sm:$0xff]
        %v1870 = vld [vmem:[%s16 + $0x58] sm:$0xff]
        %v1871 = vld [vmem:[%s16 + $0x60] sm:$0xff]
        %v1872 = vld [vmem:[%s16 + $0x68] sm:$0xff]
        %v1873 = vld [vmem:[%s16 + $0x70] sm:$0xff]
        %v1874 = vld [vmem:[%s16 + $0x78] sm:$0xff]
        %v1875 = vmul.f32 %v1859, %v1695
        %v1876 = vmul.f32 %v1860, %v1696
        %v1877 = vmul.f32 %v1861, %v1697
        %v1878 = vmul.f32 %v1862, %v1698
        %v1879 = vmul.f32 %v1863, %v1699
        %v1880 = vmul.f32 %v1864, %v1700
        %v1881 = vmul.f32 %v1865, %v1701
        %v1882 = vmul.f32 %v1866, %v1702
        %v1883 = vmul.f32 %v1867, %v1703
        %v1884 = vmul.f32 %v1868, %v1704
        %v1885 = vmul.f32 %v1869, %v1705
        %v1886 = vmul.f32 %v1870, %v1706
        %v1887 = vmul.f32 %v1871, %v1707
        %v1888 = vmul.f32 %v1872, %v1708
        %v1889 = vmul.f32 %v1873, %v1709
        %v1890 = vmul.f32 %v1874, %v1710
        %v1891 = vadd.f32 %v1843, %v1875
        %v1892 = vadd.f32 %v1844, %v1876
        %v1893 = vadd.f32 %v1845, %v1877
        %v1894 = vadd.f32 %v1846, %v1878
        %v1895 = vadd.f32 %v1847, %v1879
        %v1896 = vadd.f32 %v1848, %v1880
        %v1897 = vadd.f32 %v1849, %v1881
        %v1898 = vadd.f32 %v1850, %v1882
        %v1899 = vadd.f32 %v1851, %v1883
        %v1900 = vadd.f32 %v1852, %v1884
        %v1901 = vadd.f32 %v1853, %v1885
        %v1902 = vadd.f32 %v1854, %v1886
        %v1903 = vadd.f32 %v1855, %v1887
        %v1904 = vadd.f32 %v1856, %v1888
        %v1905 = vadd.f32 %v1857, %v1889
        %v1906 = vadd.f32 %v1858, %v1890
        %1908 = vset.pattern.permute.xlu0 0
        %1909 = vperm.xlu0 %1908, %v1891
        %v1910 = vpop.permute.xlu0 %1909
        %1913 = vset.pattern.permute.xlu0 0
        %1914 = vperm.xlu0 %1913, %v1892
        %v1915 = vpop.permute.xlu0 %1914
        %1918 = vset.pattern.permute.xlu0 0
        %1919 = vperm.xlu0 %1918, %v1893
        %v1920 = vpop.permute.xlu0 %1919
        %1923 = vset.pattern.permute.xlu0 0
        %1924 = vperm.xlu0 %1923, %v1894
        %v1925 = vpop.permute.xlu0 %1924
        %1928 = vset.pattern.permute.xlu0 0
        %1929 = vperm.xlu0 %1928, %v1895
        %v1930 = vpop.permute.xlu0 %1929
        %1933 = vset.pattern.permute.xlu0 0
        %1934 = vperm.xlu0 %1933, %v1896
        %v1935 = vpop.permute.xlu0 %1934
        %1938 = vset.pattern.permute.xlu0 0
        %1939 = vperm.xlu0 %1938, %v1897
        %v1940 = vpop.permute.xlu0 %1939
        %1943 = vset.pattern.permute.xlu0 0
        %1944 = vperm.xlu0 %1943, %v1898
        %v1945 = vpop.permute.xlu0 %1944
        %1948 = vset.pattern.permute.xlu0 0
        %1949 = vperm.xlu0 %1948, %v1899
        %v1950 = vpop.permute.xlu0 %1949
        %1953 = vset.pattern.permute.xlu0 0
        %1954 = vperm.xlu0 %1953, %v1900
        %v1955 = vpop.permute.xlu0 %1954
        %1958 = vset.pattern.permute.xlu0 0
        %1959 = vperm.xlu0 %1958, %v1901
        %v1960 = vpop.permute.xlu0 %1959
        %1963 = vset.pattern.permute.xlu0 0
        %1964 = vperm.xlu0 %1963, %v1902
        %v1965 = vpop.permute.xlu0 %1964
        %1968 = vset.pattern.permute.xlu0 0
        %1969 = vperm.xlu0 %1968, %v1903
        %v1970 = vpop.permute.xlu0 %1969
        %1973 = vset.pattern.permute.xlu0 0
        %1974 = vperm.xlu0 %1973, %v1904
        %v1975 = vpop.permute.xlu0 %1974
        %1978 = vset.pattern.permute.xlu0 0
        %1979 = vperm.xlu0 %1978, %v1905
        %v1980 = vpop.permute.xlu0 %1979
        %1983 = vset.pattern.permute.xlu0 0
        %1984 = vperm.xlu0 %1983, %v1906
        %v1985 = vpop.permute.xlu0 %1984
        %1987 = vmatpush.msra.mxu0 %v1662
        %1988 = vmatpush.msra.mxu0 %v1661
        %1989 = vmatpush.msra.mxu0 %v1660
        %1990 = vmatpush.msra.mxu0 %v1659
        %1991 = vmatpush.msra.mxu0 %v1658
        %1992 = vmatpush.msra.mxu0 %v1657
        %1993 = vmatpush.msra.mxu0 %v1656
        %1994 = vmatpush.msra.mxu0 %v1655
        %1995 = vmatpush.msra.mxu0 %v1654
        %1996 = vmatpush.msra.mxu0 %v1653
        %1997 = vmatpush.msra.mxu0 %v1652
        %1998 = vmatpush.msra.mxu0 %v1651
        %1999 = vmatpush.msra.mxu0 %v1650
        %2000 = vmatpush.msra.mxu0 %v1649
        %2001 = vmatpush.msra.mxu0 %v1648
        %2002 = vmatpush.msra.mxu0 %v1647
        %2003 = vmatmul.f32.gmra.mxu0 %v1827
        %v2004 = vpop.f32.mrf.mxu0
        %v2005 = vadd.f32 %v1910, %v2004
        %2006 = vmatmul.f32.gmra.mxu0 %v1828
        %v2007 = vpop.f32.mrf.mxu0
        %v2008 = vadd.f32 %v1915, %v2007
        %2009 = vmatmul.f32.gmra.mxu0 %v1829
        %v2010 = vpop.f32.mrf.mxu0
        %v2011 = vadd.f32 %v1920, %v2010
        %2012 = vmatmul.f32.gmra.mxu0 %v1830
        %v2013 = vpop.f32.mrf.mxu0
        %v2014 = vadd.f32 %v1925, %v2013
        %2015 = vmatmul.f32.gmra.mxu0 %v1831
        %v2016 = vpop.f32.mrf.mxu0
        %v2017 = vadd.f32 %v1930, %v2016
        %2018 = vmatmul.f32.gmra.mxu0 %v1832
        %v2019 = vpop.f32.mrf.mxu0
        %v2020 = vadd.f32 %v1935, %v2019
        %2021 = vmatmul.f32.gmra.mxu0 %v1833
        %v2022 = vpop.f32.mrf.mxu0
        %v2023 = vadd.f32 %v1940, %v2022
        %2024 = vmatmul.f32.gmra.mxu0 %v1834
        %v2025 = vpop.f32.mrf.mxu0
        %v2026 = vadd.f32 %v1945, %v2025
        %2027 = vmatmul.f32.gmra.mxu0 %v1835
        %v2028 = vpop.f32.mrf.mxu0
        %v2029 = vadd.f32 %v1950, %v2028
        %2030 = vmatmul.f32.gmra.mxu0 %v1836
        %v2031 = vpop.f32.mrf.mxu0
        %v2032 = vadd.f32 %v1955, %v2031
        %2033 = vmatmul.f32.gmra.mxu0 %v1837
        %v2034 = vpop.f32.mrf.mxu0
        %v2035 = vadd.f32 %v1960, %v2034
        %2036 = vmatmul.f32.gmra.mxu0 %v1838
        %v2037 = vpop.f32.mrf.mxu0
        %v2038 = vadd.f32 %v1965, %v2037
        %2039 = vmatmul.f32.gmra.mxu0 %v1839
        %v2040 = vpop.f32.mrf.mxu0
        %v2041 = vadd.f32 %v1970, %v2040
        %2042 = vmatmul.f32.gmra.mxu0 %v1840
        %v2043 = vpop.f32.mrf.mxu0
        %v2044 = vadd.f32 %v1975, %v2043
        %2045 = vmatmul.f32.gmra.mxu0 %v1841
        %v2046 = vpop.f32.mrf.mxu0
        %v2047 = vadd.f32 %v1980, %v2046
        %2048 = vmatmul.f32.gmra.mxu0 %v1842
        %v2049 = vpop.f32.mrf.mxu0
        %v2050 = vadd.f32 %v1985, %v2049
        %2051 = vdwg.mxu0
        %v2052 = vmax.f32 %v2005, 0.0
        %v2053 = vmax.f32 %v2008, 0.0
        %v2054 = vmax.f32 %v2011, 0.0
        %v2055 = vmax.f32 %v2014, 0.0
        %v2056 = vmax.f32 %v2017, 0.0
        %v2057 = vmax.f32 %v2020, 0.0
        %v2058 = vmax.f32 %v2023, 0.0
        %v2059 = vmax.f32 %v2026, 0.0
        %v2060 = vmax.f32 %v2029, 0.0
        %v2061 = vmax.f32 %v2032, 0.0
        %v2062 = vmax.f32 %v2035, 0.0
        %v2063 = vmax.f32 %v2038, 0.0
        %v2064 = vmax.f32 %v2041, 0.0
        %v2065 = vmax.f32 %v2044, 0.0
        %v2066 = vmax.f32 %v2047, 0.0
        %v2067 = vmax.f32 %v2050, 0.0
        %v2068 = vld [vmem:[%s19] sm:$0xff]
        %v2069 = vld [vmem:[%s20] sm:$0xff]
        %v2070 = vld [vmem:[%s24] sm:$0xff]
        %v2071 = vld [vmem:[%s23] sm:$0x1]
        %2073 = vset.pattern.permute.xlu0 0
        %2074 = vperm.xlu0 %2073, %v2070
        %v2075 = vpop.permute.xlu0 %2074
        %v2078 = vperm.slane %v2071, 0
        %v2080 = vmul.f32 %v2075, %v2078
        %v2081 = vmul.f32 %v2069, %v2080
        %v2082 = vadd.f32 %v2068, %v2081
        %v2083 = vld [vmem:[%s21] sm:$0xff]
        %v2084 = vld [vmem:[%s22] sm:$0xff]
        %v2085 = vmul.f32 %v2084, %v2070
        %v2086 = vadd.f32 %v2083, %v2085
        %2088 = vset.pattern.permute.xlu0 0
        %2089 = vperm.xlu0 %2088, %v2086
        %v2090 = vpop.permute.xlu0 %2089
        %2092 = vmatpush.msra.mxu0 %v2067
        %2093 = vmatpush.msra.mxu0 %v2066
        %2094 = vmatpush.msra.mxu0 %v2065
        %2095 = vmatpush.msra.mxu0 %v2064
        %2096 = vmatpush.msra.mxu0 %v2063
        %2097 = vmatpush.msra.mxu0 %v2062
        %2098 = vmatpush.msra.mxu0 %v2061
        %2099 = vmatpush.msra.mxu0 %v2060
        %2100 = vmatpush.msra.mxu0 %v2059
        %2101 = vmatpush.msra.mxu0 %v2058
        %2102 = vmatpush.msra.mxu0 %v2057
        %2103 = vmatpush.msra.mxu0 %v2056
        %2104 = vmatpush.msra.mxu0 %v2055
        %2105 = vmatpush.msra.mxu0 %v2054
        %2106 = vmatpush.msra.mxu0 %v2053
        %2107 = vmatpush.msra.mxu0 %v2052
        %2108 = vmatmul.f32.gmra.mxu0 %v2082
        %v2109 = vpop.f32.mrf.mxu0
        %v2110 = vadd.f32 %v2090, %v2109
        %2111 = vdwg.mxu0
        %v2112 = vtanh.pop %v2110
        %2113 = vst [vmem:[%s801] sm:$0xff] %v2112
        %p2114 = scmp.lt.s32.totalorder %s36, 1
        %s2115 = scalar_select %p2114, %s36, 1
        %s2116 = smul.addr %s2115, 8
        %s2117 = scalar_lea.vmem %s25, %s2116
        // Predicated region
        $region159: #{policy_network_forward.1} parent=153 // pred_check
          %p2118 = pneg %p584
        $region160: #{policy_network_forward.1} parent=153 // pred_check_branch
          %2120 = sbr.rel (%p2118) target = $region162
        $region161: #{policy_network_forward.1} parent=153 // pred_region
          _
        $region162: #{policy_network_forward.1} parent=153 // pred_fallthru
          _
      $region154: #{policy_network_forward.1} parent=5 // pred_fallthru
        _
      %p2121 = scmp.le.s32.totalorder 2, %s31
      // Predicated region
      $region163: #{policy_network_forward.1} parent=5 // pred_check
        %p2122 = pneg %p2121
      $region164: #{policy_network_forward.1} parent=5 // pred_check_branch
        %2124 = sbr.rel (%p2122) target = $region166
      $region165: #{policy_network_forward.1} parent=5 // pred_region
        %s2125 = ssub.s32 %s31, 2
        // Predicated region
        $region167: #{policy_network_forward.1} parent=165 // pred_check
          %p2126 = pneg %p590
        $region168: #{policy_network_forward.1} parent=165 // pred_check_branch
          %2128 = sbr.rel (%p2126) target = $region170
        $region169: #{policy_network_forward.1} parent=165 // pred_region
          %p2129 = scmp.lt.s32.totalorder %s37, 1
          %s2130 = scalar_select %p2129, %s37, 1
          %s2131 = smul.addr %s2130, 8
          %s2132 = scalar_lea.vmem %s25, %s2131
        $region170: #{policy_network_forward.1} parent=165 // pred_fallthru
          _
      $region166: #{policy_network_forward.1} parent=5 // pred_fallthru
        _
    $region6: #{policy_network_forward.1} parent=1 // loop_footer
      %s35 = sadd.s32 1, %s31
    $region7: #{policy_network_forward.1} parent=1 // loop_footer_branch
      %30 = sbr.rel target = $region3
    $region8: #{policy_network_forward.1} parent=1 // loop_exit
      _

</llo_original>
